<compile_context>
chip_gen: v7x
topology: tpu7x:2x2x1
jax: 0.10.0
libtpu: 0.0.40
codegen_flags: <defaults>
</compile_context>

<pallas_src>
import jax
import jax.numpy as jnp
from jax.experimental import pallas as pl
from jax.experimental.pallas import tpu as pltpu

R = 64
T = 64
POOLED = 32                  # floor((64 - 1) / 2) + 1
FEAT = POOLED * POOLED       # 32 * 32 = 1024
H1, H2, OUT = 512, 256, 217
OUT_PAD = 256                # pad 217 -> 256 so the last matmul/store is lane-dense


def _round_up(n, m):
    return (n + m - 1) // m * m


def _trace_layer_kernel(x_ref, wt_ref, bt_ref, w1_ref, b1_ref,
                        w2_ref, b2_ref, w3_ref, b3_ref, out_ref):
    # TraceLine elementwise (per-R filter + scalar bias) fused with ReLU, in f32.
    feat = jnp.maximum(x_ref[...] * wt_ref[...] + bt_ref[0, 0], 0.0)      # (bm, 1024)
    # Classifier: bf16 operands on the MXU, f32 accumulation, f32 bias/ReLU.
    h1 = jnp.dot(feat.astype(jnp.bfloat16), w1_ref[...],
                 preferred_element_type=jnp.float32) + b1_ref[...]
    h1 = jnp.maximum(h1, 0.0)
    h2 = jnp.dot(h1.astype(jnp.bfloat16), w2_ref[...],
                 preferred_element_type=jnp.float32) + b2_ref[...]
    h2 = jnp.maximum(h2, 0.0)
    out_ref[...] = (jnp.dot(h2.astype(jnp.bfloat16), w3_ref[...],
                            preferred_element_type=jnp.float32)
                    + b3_ref[...]).astype(out_ref.dtype)


def prepare_params(params):
    """One-time preprocessing of the PyTorch-layout parameters."""
    # Kernel feature order is ri-major (ri*32 + ti), matching
    # x[:, 0, ::2, ::2].reshape(N, 1024):  w_flat[ri*32 + ti] = trace_w[2*ri].
    w_sub = params["trace_w"][::2, 0]
    w_flat = jnp.repeat(w_sub, POOLED).reshape(1, FEAT).astype(jnp.float32)
    # The reference flatten order is ti-major (ti*32 + ri).  The MLP is
    # permutation-invariant in its input features, so fold the transpose into
    # w1's row order instead of transposing x every call:
    #   w1p[ri*32 + ti, :] = w1[ti*32 + ri, :]
    w1p = (params["w1"].reshape(POOLED, POOLED, H1)   # [ti, ri, :]
           .transpose(1, 0, 2)                        # [ri, ti, :]
           .reshape(FEAT, H1))
    # Zero-pad last layer 217 -> 256 output lanes; wrapper slices them off.
    w3p = jnp.pad(params["w3"], ((0, 0), (0, OUT_PAD - OUT)))
    b3p = jnp.pad(params["b3"], ((0, OUT_PAD - OUT),))
    return {
        "wt": w_flat,                                                   # (1, 1024) f32
        "bt": params["trace_b"].reshape(1, 1).astype(jnp.float32),      # (1, 1)   f32 (SMEM)
        "w1": w1p.astype(jnp.bfloat16),                                 # (1024, 512)
        "b1": params["b1"].reshape(1, H1).astype(jnp.float32),
        "w2": params["w2"].astype(jnp.bfloat16),                        # (512, 256)
        "b2": params["b2"].reshape(1, H2).astype(jnp.float32),
        "w3": w3p.astype(jnp.bfloat16),                                 # (256, 256)
        "b3": b3p.reshape(1, OUT_PAD).astype(jnp.float32),
    }


def trace_layer_forward(x, prepared):
    """x: (N, 1, 64, 64) float32 -> (N, 217) float32."""
    N = x.shape[0]
    # MaxPool2d(kernel=1, stride=2) over the TraceLine output is a stride-2
    # subsample of x; the (T, R) permute is folded into w1, so only this small
    # (N, 32, 32) strided slice happens outside the kernel.
    x_sub = x[:, 0, ::2, ::2].reshape(N, FEAT).astype(jnp.float32)

    # Batch tiling: sublane-aligned tiles, up to 128 MXU rows per grid step.
    bm = min(128, _round_up(N, 8))
    n_pad = _round_up(N, bm)
    if n_pad != N:
        x_sub = jnp.pad(x_sub, ((0, n_pad - N), (0, 0)))
    grid = (n_pad // bm,)

    out = pl.pallas_call(
        _trace_layer_kernel,
        out_shape=jax.ShapeDtypeStruct((n_pad, OUT_PAD), jnp.float32),
        grid=grid,
        in_specs=[
            pl.BlockSpec((bm, FEAT), lambda i: (i, 0)),          # x tile (pipelined)
            pl.BlockSpec((1, FEAT), lambda i: (0, 0)),           # trace weight (resident)
            pl.BlockSpec(memory_space=pltpu.MemorySpace.SMEM),   # trace bias scalar
            pl.BlockSpec((FEAT, H1), lambda i: (0, 0)),          # w1 (resident, bf16)
            pl.BlockSpec((1, H1), lambda i: (0, 0)),             # b1
            pl.BlockSpec((H1, H2), lambda i: (0, 0)),            # w2 (resident, bf16)
            pl.BlockSpec((1, H2), lambda i: (0, 0)),             # b2
            pl.BlockSpec((H2, OUT_PAD), lambda i: (0, 0)),       # w3 padded (resident)
            pl.BlockSpec((1, OUT_PAD), lambda i: (0, 0)),        # b3 padded
        ],
        out_specs=pl.BlockSpec((bm, OUT_PAD), lambda i: (i, 0)),
        compiler_params=pltpu.CompilerParams(
            dimension_semantics=("parallel",)),
    )(x_sub, prepared["wt"], prepared["bt"],
      prepared["w1"], prepared["b1"],
      prepared["w2"], prepared["b2"],
      prepared["w3"], prepared["b3"])

    return out[:N, :OUT]


def trace_layer_reference(x, params):
    """Pure-JAX f32 reference reproducing the PyTorch forward exactly."""
    N = x.shape[0]
    w = params["trace_w"]                       # (R, 1)
    b = params["trace_b"]                       # (1, 1)
    h = jnp.transpose(x, (0, 1, 3, 2)) * w[None, None, None, :, 0] + b[0, 0]
    h = jnp.maximum(h, 0.0)                     # ReLU
    p = h[:, :, ::2, ::2]                       # MaxPool2d(kernel=1, stride=2)
    feat = p.reshape(N, -1)                     # (N, 1024)
    h1 = jnp.maximum(feat @ params["w1"] + params["b1"], 0.0)
    h2 = jnp.maximum(h1 @ params["w2"] + params["b2"], 0.0)
    return h2 @ params["w3"] + params["b3"]


def init_params(key):
    ks = jax.random.split(key, 8)
    return {
        "trace_w": jax.random.normal(ks[0], (R, 1), jnp.float32),        # nn.Parameter(randn(R,1))
        "trace_b": jax.random.normal(ks[1], (1, 1), jnp.float32),        # nn.Parameter(randn(1,1))
        "w1": jax.random.normal(ks[2], (FEAT, H1), jnp.float32) * 0.02,  # Linear(1024,512)
        "b1": jax.random.normal(ks[3], (H1,), jnp.float32) * 0.02,
        "w2": jax.random.normal(ks[4], (H1, H2), jnp.float32) * 0.02,    # Linear(512,256)
        "b2": jax.random.normal(ks[5], (H2,), jnp.float32) * 0.02,
        "w3": jax.random.normal(ks[6], (H2, OUT), jnp.float32) * 0.02,   # Linear(256,217)
        "b3": jax.random.normal(ks[7], (OUT,), jnp.float32) * 0.02,
    }


if __name__ == "__main__":
    key = jax.random.PRNGKey(0)
    k_x, k_p = jax.random.split(key)
    # classifier input size 32*32 forces F=1, R=T=64
    x = jax.random.normal(k_x, (2, 1, R, T), jnp.float32)
    params = init_params(k_p)
    prepared = prepare_params(params)           # one-time weight preprocessing

    out = jax.block_until_ready(trace_layer_forward(x, prepared))
    ref = jax.block_until_ready(trace_layer_reference(x, params))

    assert out.shape == (2, OUT), out.shape
    # bf16 matmul operands (f32 accumulation) -> bf16-appropriate tolerance
    # against the pure-f32 reference.
    err = float(jnp.max(jnp.abs(out - ref)))
    assert jnp.allclose(out, ref, rtol=5e-2, atol=2e-2), err
    print("KERNEL_OK")
</pallas_src>

<mosaic_0001>
module attributes {stable_mosaic.version = 11 : i64} {
  func.func @_trace_layer_kernel(%arg0: i32, %arg1: memref<8x1024xf32, #tpu.memory_space<vmem>>, %arg2: memref<1x1024xf32, #tpu.memory_space<vmem>>, %arg3: memref<1x1xf32, #tpu.memory_space<smem>>, %arg4: memref<1024x512xbf16, #tpu.memory_space<vmem>>, %arg5: memref<1x512xf32, #tpu.memory_space<vmem>>, %arg6: memref<512x256xbf16, #tpu.memory_space<vmem>>, %arg7: memref<1x256xf32, #tpu.memory_space<vmem>>, %arg8: memref<256x256xbf16, #tpu.memory_space<vmem>>, %arg9: memref<1x256xf32, #tpu.memory_space<vmem>>, %arg10: memref<8x256xf32, #tpu.memory_space<vmem>>) attributes {dimension_semantics = [#tpu.dimension_semantics<parallel>], iteration_bounds = array<i64: 1>, scalar_prefetch = 0 : i64, scratch_operands = 0 : i64, tpu.core_type = #tpu.core_type<tc>, window_params = [{transform_indices = @transform_0, window_bounds = array<i64: 8, 1024>}, {pipeline_mode = #tpu.pipeline_mode<synchronous>, transform_indices = @transform_1, window_bounds = array<i64: 1, 1024>}, {transform_indices = @transform_2, window_bounds = array<i64: 1, 1>}, {pipeline_mode = #tpu.pipeline_mode<synchronous>, transform_indices = @transform_3, window_bounds = array<i64: 1024, 512>}, {pipeline_mode = #tpu.pipeline_mode<synchronous>, transform_indices = @transform_4, window_bounds = array<i64: 1, 512>}, {pipeline_mode = #tpu.pipeline_mode<synchronous>, transform_indices = @transform_5, window_bounds = array<i64: 512, 256>}, {pipeline_mode = #tpu.pipeline_mode<synchronous>, transform_indices = @transform_6, window_bounds = array<i64: 1, 256>}, {pipeline_mode = #tpu.pipeline_mode<synchronous>, transform_indices = @transform_7, window_bounds = array<i64: 256, 256>}, {pipeline_mode = #tpu.pipeline_mode<synchronous>, transform_indices = @transform_8, window_bounds = array<i64: 1, 256>}, {transform_indices = @transform_9, window_bounds = array<i64: 8, 256>}]} {
    %c0 = arith.constant 0 : index
    %c0_0 = arith.constant 0 : index
    %0 = vector.load %arg1[%c0, %c0_0] : memref<8x1024xf32, #tpu.memory_space<vmem>>, vector<8x1024xf32>
    %c0_1 = arith.constant 0 : index
    %c0_2 = arith.constant 0 : index
    %1 = vector.load %arg2[%c0_1, %c0_2] : memref<1x1024xf32, #tpu.memory_space<vmem>>, vector<1x1024xf32>
    %2 = vector.broadcast %1 : vector<1x1024xf32> to vector<8x1024xf32>
    %3 = arith.mulf %0, %2 : vector<8x1024xf32>
    %c0_3 = arith.constant 0 : index
    %c0_4 = arith.constant 0 : index
    %4 = memref.load %arg3[%c0_3, %c0_4] : memref<1x1xf32, #tpu.memory_space<smem>>
    %5 = vector.broadcast %4 : f32 to vector<8x1024xf32>
    %6 = arith.addf %3, %5 : vector<8x1024xf32>
    %cst = arith.constant 0.000000e+00 : f32
    %7 = vector.broadcast %cst : f32 to vector<8x1024xf32>
    %8 = arith.maximumf %6, %7 : vector<8x1024xf32>
    %9 = arith.truncf %8 : vector<8x1024xf32> to vector<8x1024xbf16>
    %c0_5 = arith.constant 0 : index
    %c0_6 = arith.constant 0 : index
    %10 = vector.load %arg4[%c0_5, %c0_6] : memref<1024x512xbf16, #tpu.memory_space<vmem>>, vector<1024x512xbf16>
    %cst_7 = arith.constant dense<0.000000e+00> : vector<8x512xf32>
    %11 = tpu.matmul %9, %10, %cst_7 {dimension_numbers = #tpu.dot_dimension_numbers<[1], [0], [0], [1], [0, 0, 1, 1], [], []>} : vector<8x1024xbf16>, vector<1024x512xbf16>, vector<8x512xf32> -> vector<8x512xf32>
    %c0_8 = arith.constant 0 : index
    %c0_9 = arith.constant 0 : index
    %12 = vector.load %arg5[%c0_8, %c0_9] : memref<1x512xf32, #tpu.memory_space<vmem>>, vector<1x512xf32>
    %13 = vector.broadcast %12 : vector<1x512xf32> to vector<8x512xf32>
    %14 = arith.addf %11, %13 : vector<8x512xf32>
    %cst_10 = arith.constant 0.000000e+00 : f32
    %15 = vector.broadcast %cst_10 : f32 to vector<8x512xf32>
    %16 = arith.maximumf %14, %15 : vector<8x512xf32>
    %17 = arith.truncf %16 : vector<8x512xf32> to vector<8x512xbf16>
    %c0_11 = arith.constant 0 : index
    %c0_12 = arith.constant 0 : index
    %18 = vector.load %arg6[%c0_11, %c0_12] : memref<512x256xbf16, #tpu.memory_space<vmem>>, vector<512x256xbf16>
    %cst_13 = arith.constant dense<0.000000e+00> : vector<8x256xf32>
    %19 = tpu.matmul %17, %18, %cst_13 {dimension_numbers = #tpu.dot_dimension_numbers<[1], [0], [0], [1], [0, 0, 1, 1], [], []>} : vector<8x512xbf16>, vector<512x256xbf16>, vector<8x256xf32> -> vector<8x256xf32>
    %c0_14 = arith.constant 0 : index
    %c0_15 = arith.constant 0 : index
    %20 = vector.load %arg7[%c0_14, %c0_15] : memref<1x256xf32, #tpu.memory_space<vmem>>, vector<1x256xf32>
    %21 = vector.broadcast %20 : vector<1x256xf32> to vector<8x256xf32>
    %22 = arith.addf %19, %21 : vector<8x256xf32>
    %cst_16 = arith.constant 0.000000e+00 : f32
    %23 = vector.broadcast %cst_16 : f32 to vector<8x256xf32>
    %24 = arith.maximumf %22, %23 : vector<8x256xf32>
    %25 = arith.truncf %24 : vector<8x256xf32> to vector<8x256xbf16>
    %c0_17 = arith.constant 0 : index
    %c0_18 = arith.constant 0 : index
    %26 = vector.load %arg8[%c0_17, %c0_18] : memref<256x256xbf16, #tpu.memory_space<vmem>>, vector<256x256xbf16>
    %cst_19 = arith.constant dense<0.000000e+00> : vector<8x256xf32>
    %27 = tpu.matmul %25, %26, %cst_19 {dimension_numbers = #tpu.dot_dimension_numbers<[1], [0], [0], [1], [0, 0, 1, 1], [], []>} : vector<8x256xbf16>, vector<256x256xbf16>, vector<8x256xf32> -> vector<8x256xf32>
    %c0_20 = arith.constant 0 : index
    %c0_21 = arith.constant 0 : index
    %28 = vector.load %arg9[%c0_20, %c0_21] : memref<1x256xf32, #tpu.memory_space<vmem>>, vector<1x256xf32>
    %29 = vector.broadcast %28 : vector<1x256xf32> to vector<8x256xf32>
    %30 = arith.addf %27, %29 : vector<8x256xf32>
    %c0_22 = arith.constant 0 : index
    %c0_23 = arith.constant 0 : index
    %31 = vector.load %arg10[%c0_22, %c0_23] : memref<8x256xf32, #tpu.memory_space<vmem>>, vector<8x256xf32>
    tpu.vector_store %arg10[%c0_22, %c0_23], %30 {strides = array<i32>} : memref<8x256xf32, #tpu.memory_space<vmem>>, vector<8x256xf32>,
    return
  }
  func.func @transform_0(%arg0: i32) -> (i32, i32) {
    %c0_i32 = arith.constant 0 : i32
    %c0_i32_0 = arith.constant 0 : i32
    return %arg0, %c0_i32 : i32, i32
  }
  func.func @transform_1(%arg0: i32) -> (i32, i32) {
    %c0_i32 = arith.constant 0 : i32
    %c0_i32_0 = arith.constant 0 : i32
    %c0_i32_1 = arith.constant 0 : i32
    return %c0_i32, %c0_i32_0 : i32, i32
  }
  func.func @transform_2(%arg0: i32) -> (i32, i32) {
    %c0_i32 = arith.constant 0 : i32
    %c0_i32_0 = arith.constant 0 : i32
    %c0_i32_1 = arith.constant 0 : i32
    return %c0_i32, %c0_i32_0 : i32, i32
  }
  func.func @transform_3(%arg0: i32) -> (i32, i32) {
    %c0_i32 = arith.constant 0 : i32
    %c0_i32_0 = arith.constant 0 : i32
    %c0_i32_1 = arith.constant 0 : i32
    return %c0_i32, %c0_i32_0 : i32, i32
  }
  func.func @transform_4(%arg0: i32) -> (i32, i32) {
    %c0_i32 = arith.constant 0 : i32
    %c0_i32_0 = arith.constant 0 : i32
    %c0_i32_1 = arith.constant 0 : i32
    return %c0_i32, %c0_i32_0 : i32, i32
  }
  func.func @transform_5(%arg0: i32) -> (i32, i32) {
    %c0_i32 = arith.constant 0 : i32
    %c0_i32_0 = arith.constant 0 : i32
    %c0_i32_1 = arith.constant 0 : i32
    return %c0_i32, %c0_i32_0 : i32, i32
  }
  func.func @transform_6(%arg0: i32) -> (i32, i32) {
    %c0_i32 = arith.constant 0 : i32
    %c0_i32_0 = arith.constant 0 : i32
    %c0_i32_1 = arith.constant 0 : i32
    return %c0_i32, %c0_i32_0 : i32, i32
  }
  func.func @transform_7(%arg0: i32) -> (i32, i32) {
    %c0_i32 = arith.constant 0 : i32
    %c0_i32_0 = arith.constant 0 : i32
    %c0_i32_1 = arith.constant 0 : i32
    return %c0_i32, %c0_i32_0 : i32, i32
  }
  func.func @transform_8(%arg0: i32) -> (i32, i32) {
    %c0_i32 = arith.constant 0 : i32
    %c0_i32_0 = arith.constant 0 : i32
    %c0_i32_1 = arith.constant 0 : i32
    return %c0_i32, %c0_i32_0 : i32, i32
  }
  func.func @transform_9(%arg0: i32) -> (i32, i32) {
    %c0_i32 = arith.constant 0 : i32
    %c0_i32_0 = arith.constant 0 : i32
    return %arg0, %c0_i32 : i32, i32
  }
}

</mosaic_0001>

<llo_original>
// kernel: tpu_custom_call.1
$region0: #{tpu_custom_call.1}
  #allocation0 [shape = 'u32[]', space=smem, size = 0x4, offset = 0x4, fixed_abs, tag = 'smem constant byte address 0x4 - core index']
  #allocation1 [shape = 'u32[144,128]{1,0:T(1,128)}', space=vmem, size = 0x12000, scoped, tag = 'internal scratch']
  #allocation2 [shape = 'f32[1,1]{1,0:T(1,128)S(6)}', space=smem, size = 0x200, scoped, tag = 'scoped memory for tpu_custom_call.1']
  %s0 = inlined_call_operand.hbm [shape: f32[8,1024], index: 0, kind: input, shape index: {}]
  %s1 = inlined_call_operand.hbm [shape: f32[1,1024], index: 1, kind: input, shape index: {}]
  %s2 = inlined_call_operand.<no memory space> [shape: f32[1,1], index: 2, kind: input, shape index: {}]
  %s3 = inlined_call_operand.hbm [shape: bf16[1024,512], index: 3, kind: input, shape index: {}]
  %s4 = inlined_call_operand.vmem [shape: f32[1,512], index: 4, kind: input, shape index: {}]
  %s5 = inlined_call_operand.hbm [shape: bf16[512,256], index: 5, kind: input, shape index: {}]
  %s6 = inlined_call_operand.vmem [shape: f32[1,256], index: 6, kind: input, shape index: {}]
  %s7 = inlined_call_operand.hbm [shape: bf16[256,256], index: 7, kind: input, shape index: {}]
  %s8 = inlined_call_operand.vmem [shape: f32[1,256], index: 8, kind: input, shape index: {}]
  %s9 = inlined_call_operand.hbm [shape: f32[8,256], index: 9, kind: output, shape index: {}]
  %s10 = sld [smem:[#allocation0]]
  $region66: #{tpu_custom_call.1} parent=0
    _
  %s12 = ssub.s32 1, %s10
  %s13 = scalar_select 0, %s12, %s10
  %14 = sst [smem:[#allocation2]] %s2
  $region1: #{tpu_custom_call.1} parent=0
    #allocation3 [shape = 'u8[32768]{0}', space=vmem, size = 0x8000, scoped, tag = 'input window, operand 0, single buffered']
    #allocation4 [shape = 's32[1]{0}', space=sflag, size = 0x4, scoped, tag = 'scoped memory for tpu_custom_call.1']
    #allocation5 [shape = 's32[1]{0}', space=sflag, size = 0x4, scoped, tag = 'scoped memory for tpu_custom_call.1']
    #allocation6 [shape = 'u8[4096]{0}', space=vmem, size = 0x1000, scoped, tag = 'input window, operand 1, single buffered']
    #allocation7 [shape = 's32[1]{0}', space=sflag, size = 0x4, scoped, tag = 'scoped memory for tpu_custom_call.1']
    #allocation8 [shape = 'u8[1048576]{0}', space=vmem, size = 0x100000, scoped, tag = 'input window, operand 3, single buffered']
    #allocation9 [shape = 'u8[262144]{0}', space=vmem, size = 0x40000, scoped, tag = 'input window, operand 5, single buffered']
    #allocation10 [shape = 's32[1]{0}', space=sflag, size = 0x4, scoped, tag = 'scoped memory for tpu_custom_call.1']
    #allocation11 [shape = 'u8[131072]{0}', space=vmem, size = 0x20000, scoped, tag = 'input window, operand 7, single buffered']
    #allocation12 [shape = 'u8[8192]{0}', space=vmem, size = 0x2000, scoped, tag = 'output window, operand 0, single buffered']
    %15 = vsyncpa [#allocation4], 0
    %16 = vsyncpa [#allocation7], 0
    %17 = vsyncpa [#allocation10], 0
    %18 = vsyncpa [#allocation5], 0
    // Predicated region
    $region2: #{tpu_custom_call.1} parent=1 // pred_check
      _
    $region3: #{tpu_custom_call.1} parent=1 // pred_check_branch
      %20 = sbr.rel (0) target = $region5
    $region4: #{tpu_custom_call.1} parent=1 // pred_region
      %s22 = ssub.s32 1024, 1024
      %23 = vsyncadd [#allocation4], %s22
      %s25 = sshll.u32 [#allocation3], 4
      %s26 = int_to_ptr.vmem [resolvable:$true] %s25
      %28 = dma.hbm_to_vmem [thread:$0]  %s0, 1024, %s26, [#allocation4]
    $region5: #{tpu_custom_call.1} parent=1 // pred_fallthru
      _
    // Predicated region
    $region6: #{tpu_custom_call.1} parent=1 // pred_check
      _
    $region7: #{tpu_custom_call.1} parent=1 // pred_check_branch
      %30 = sbr.rel (0) target = $region9
    $region8: #{tpu_custom_call.1} parent=1 // pred_region
      %s32 = ssub.s32 128, 128
      %33 = vsyncadd [#allocation7], %s32
      %s35 = sshll.u32 [#allocation6], 4
      %s36 = int_to_ptr.vmem [resolvable:$true] %s35
      %38 = dma.hbm_to_vmem [thread:$0]  %s1, 128, %s36, [#allocation7]
    $region9: #{tpu_custom_call.1} parent=1 // pred_fallthru
      _
    // Predicated region
    $region10: #{tpu_custom_call.1} parent=1 // pred_check
      _
    $region11: #{tpu_custom_call.1} parent=1 // pred_check_branch
      %40 = sbr.rel (0) target = $region13
    $region12: #{tpu_custom_call.1} parent=1 // pred_region
      _
    $region13: #{tpu_custom_call.1} parent=1 // pred_fallthru
      _
    // Predicated region
    $region14: #{tpu_custom_call.1} parent=1 // pred_check
      _
    $region15: #{tpu_custom_call.1} parent=1 // pred_check_branch
      %42 = sbr.rel (0) target = $region17
    $region16: #{tpu_custom_call.1} parent=1 // pred_region
      %s44 = ssub.s32 32768, 32768
      %45 = vsyncadd [#allocation7], %s44
      %s46 = sshll.u32 [#allocation8], 4
      %s47 = int_to_ptr.vmem [resolvable:$true] %s46
      %52 = dma.hbm_to_vmem [thread:$0]  %s3, 32768, %s47, [#allocation7], 256, 256, 16
    $region17: #{tpu_custom_call.1} parent=1 // pred_fallthru
      _
    // Predicated region
    $region18: #{tpu_custom_call.1} parent=1 // pred_check
      _
    $region19: #{tpu_custom_call.1} parent=1 // pred_check_branch
      %54 = sbr.rel (0) target = $region21
    $region20: #{tpu_custom_call.1} parent=1 // pred_region
      _
    $region21: #{tpu_custom_call.1} parent=1 // pred_fallthru
      _
    // Predicated region
    $region22: #{tpu_custom_call.1} parent=1 // pred_check
      _
    $region23: #{tpu_custom_call.1} parent=1 // pred_check_branch
      %56 = sbr.rel (0) target = $region25
    $region24: #{tpu_custom_call.1} parent=1 // pred_region
      %s58 = ssub.s32 8192, 8192
      %59 = vsyncadd [#allocation10], %s58
      %s60 = sshll.u32 [#allocation9], 4
      %s61 = int_to_ptr.vmem [resolvable:$true] %s60
      %66 = dma.hbm_to_vmem [thread:$0]  %s5, 8192, %s61, [#allocation10], 128, 128, 8
    $region25: #{tpu_custom_call.1} parent=1 // pred_fallthru
      _
    // Predicated region
    $region26: #{tpu_custom_call.1} parent=1 // pred_check
      _
    $region27: #{tpu_custom_call.1} parent=1 // pred_check_branch
      %68 = sbr.rel (0) target = $region29
    $region28: #{tpu_custom_call.1} parent=1 // pred_region
      _
    $region29: #{tpu_custom_call.1} parent=1 // pred_fallthru
      _
    // Predicated region
    $region30: #{tpu_custom_call.1} parent=1 // pred_check
      _
    $region31: #{tpu_custom_call.1} parent=1 // pred_check_branch
      %70 = sbr.rel (0) target = $region33
    $region32: #{tpu_custom_call.1} parent=1 // pred_region
      %s72 = ssub.s32 4096, 4096
      %73 = vsyncadd [#allocation10], %s72
      %s74 = sshll.u32 [#allocation11], 4
      %s75 = int_to_ptr.vmem [resolvable:$true] %s74
      %80 = dma.hbm_to_vmem [thread:$0]  %s7, 4096, %s75, [#allocation10], 128, 128, 8
    $region33: #{tpu_custom_call.1} parent=1 // pred_fallthru
      _
    // Predicated region
    $region34: #{tpu_custom_call.1} parent=1 // pred_check
      _
    $region35: #{tpu_custom_call.1} parent=1 // pred_check_branch
      %82 = sbr.rel (0) target = $region37
    $region36: #{tpu_custom_call.1} parent=1 // pred_region
      _
    $region37: #{tpu_custom_call.1} parent=1 // pred_fallthru
      _
    // Predicated region
    $region38: #{tpu_custom_call.1} parent=1 // pred_check
      _
    $region39: #{tpu_custom_call.1} parent=1 // pred_check_branch
      %84 = sbr.rel (0) target = $region41
    $region40: #{tpu_custom_call.1} parent=1 // pred_region
      %85 = dma.done [#allocation4], 1024
    $region41: #{tpu_custom_call.1} parent=1 // pred_fallthru
      _
    // Predicated region
    $region42: #{tpu_custom_call.1} parent=1 // pred_check
      _
    $region43: #{tpu_custom_call.1} parent=1 // pred_check_branch
      %87 = sbr.rel (0) target = $region45
    $region44: #{tpu_custom_call.1} parent=1 // pred_region
      %88 = dma.done [#allocation7], 128
    $region45: #{tpu_custom_call.1} parent=1 // pred_fallthru
      _
    // Predicated region
    $region46: #{tpu_custom_call.1} parent=1 // pred_check
      _
    $region47: #{tpu_custom_call.1} parent=1 // pred_check_branch
      %90 = sbr.rel (0) target = $region49
    $region48: #{tpu_custom_call.1} parent=1 // pred_region
      %91 = dma.done [#allocation7], 32768
    $region49: #{tpu_custom_call.1} parent=1 // pred_fallthru
      _
    // Predicated region
    $region50: #{tpu_custom_call.1} parent=1 // pred_check
      _
    $region51: #{tpu_custom_call.1} parent=1 // pred_check_branch
      %93 = sbr.rel (0) target = $region53
    $region52: #{tpu_custom_call.1} parent=1 // pred_region
      %94 = dma.done [#allocation10], 8192
    $region53: #{tpu_custom_call.1} parent=1 // pred_fallthru
      _
    // Predicated region
    $region54: #{tpu_custom_call.1} parent=1 // pred_check
      _
    $region55: #{tpu_custom_call.1} parent=1 // pred_check_branch
      %96 = sbr.rel (0) target = $region57
    $region56: #{tpu_custom_call.1} parent=1 // pred_region
      %97 = dma.done [#allocation10], 4096
    $region57: #{tpu_custom_call.1} parent=1 // pred_fallthru
      _
    %v98 = vld [vmem:[#allocation3] sm:$0xff]
    %v99 = vld [vmem:[#allocation3 + $0x8] sm:$0xff]
    %v100 = vld [vmem:[#allocation3 + $0x10] sm:$0xff]
    %v101 = vld [vmem:[#allocation3 + $0x18] sm:$0xff]
    %v102 = vld [vmem:[#allocation3 + $0x20] sm:$0xff]
    %v103 = vld [vmem:[#allocation3 + $0x28] sm:$0xff]
    %v104 = vld [vmem:[#allocation3 + $0x30] sm:$0xff]
    %v105 = vld [vmem:[#allocation3 + $0x38] sm:$0xff]
    %v106 = vld [vmem:[#allocation6] sm:$0xff]
    %v108 = vlaneseq
    %v109 = vshrl.u32 %v108, 7
    %v110 = vsub.s32 0, %v109
    %v111 = vrot.slane %v106, %v110
    %v112 = vlaneseq
    %v113 = vshrl.u32 %v112, 7
    %v114 = vsub.s32 1, %v113
    %v115 = vrot.slane %v106, %v114
    %v116 = vlaneseq
    %v117 = vshrl.u32 %v116, 7
    %v118 = vsub.s32 2, %v117
    %v119 = vrot.slane %v106, %v118
    %v120 = vlaneseq
    %v121 = vshrl.u32 %v120, 7
    %v122 = vsub.s32 3, %v121
    %v123 = vrot.slane %v106, %v122
    %v124 = vlaneseq
    %v125 = vshrl.u32 %v124, 7
    %v126 = vsub.s32 4, %v125
    %v127 = vrot.slane %v106, %v126
    %v128 = vlaneseq
    %v129 = vshrl.u32 %v128, 7
    %v130 = vsub.s32 5, %v129
    %v131 = vrot.slane %v106, %v130
    %v132 = vlaneseq
    %v133 = vshrl.u32 %v132, 7
    %v134 = vsub.s32 6, %v133
    %v135 = vrot.slane %v106, %v134
    %v136 = vlaneseq
    %v137 = vshrl.u32 %v136, 7
    %v138 = vsub.s32 7, %v137
    %v139 = vrot.slane %v106, %v138
    %v148 = vmul.f32 %v98, %v111
    %v149 = vmul.f32 %v99, %v115
    %v150 = vmul.f32 %v100, %v119
    %v151 = vmul.f32 %v101, %v123
    %v152 = vmul.f32 %v102, %v127
    %v153 = vmul.f32 %v103, %v131
    %v154 = vmul.f32 %v104, %v135
    %v155 = vmul.f32 %v105, %v139
    %s156 = sld [smem:[#allocation2]]
    %v157 = vstv %s156
    %v158 = vadd.f32 %v148, %v157
    %v159 = vadd.f32 %v149, %v157
    %v160 = vadd.f32 %v150, %v157
    %v161 = vadd.f32 %v151, %v157
    %v162 = vadd.f32 %v152, %v157
    %v163 = vadd.f32 %v153, %v157
    %v164 = vadd.f32 %v154, %v157
    %v165 = vadd.f32 %v155, %v157
    %v166 = vmax.f32 %v158, 0.0
    %v167 = vmax.f32 %v159, 0.0
    %v168 = vmax.f32 %v160, 0.0
    %v169 = vmax.f32 %v161, 0.0
    %v170 = vmax.f32 %v162, 0.0
    %v171 = vmax.f32 %v163, 0.0
    %v172 = vmax.f32 %v164, 0.0
    %v173 = vmax.f32 %v165, 0.0
    %v174 = vpack.c.bf16 %v166, %v166
    %v175 = vpack.c.bf16 %v167, %v167
    %v176 = vpack.c.bf16 %v168, %v168
    %v177 = vpack.c.bf16 %v169, %v169
    %v178 = vpack.c.bf16 %v170, %v170
    %v179 = vpack.c.bf16 %v171, %v171
    %v180 = vpack.c.bf16 %v172, %v172
    %v181 = vpack.c.bf16 %v173, %v173
    %v182 = vld [vmem:[#allocation8] sm:$0xff]
    %v183 = vld [vmem:[#allocation8 + $0x8] sm:$0xff]
    %v184 = vld [vmem:[#allocation8 + $0x10] sm:$0xff]
    %v185 = vld [vmem:[#allocation8 + $0x18] sm:$0xff]
    %v186 = vld [vmem:[#allocation8 + $0x20] sm:$0xff]
    %v187 = vld [vmem:[#allocation8 + $0x28] sm:$0xff]
    %v188 = vld [vmem:[#allocation8 + $0x30] sm:$0xff]
    %v189 = vld [vmem:[#allocation8 + $0x38] sm:$0xff]
    %v190 = vld [vmem:[#allocation8 + $0x40] sm:$0xff]
    %v191 = vld [vmem:[#allocation8 + $0x48] sm:$0xff]
    %v192 = vld [vmem:[#allocation8 + $0x50] sm:$0xff]
    %v193 = vld [vmem:[#allocation8 + $0x58] sm:$0xff]
    %v194 = vld [vmem:[#allocation8 + $0x60] sm:$0xff]
    %v195 = vld [vmem:[#allocation8 + $0x68] sm:$0xff]
    %v196 = vld [vmem:[#allocation8 + $0x70] sm:$0xff]
    %v197 = vld [vmem:[#allocation8 + $0x78] sm:$0xff]
    %v198 = vld [vmem:[#allocation8 + $0x80] sm:$0xff]
    %v199 = vld [vmem:[#allocation8 + $0x88] sm:$0xff]
    %v200 = vld [vmem:[#allocation8 + $0x90] sm:$0xff]
    %v201 = vld [vmem:[#allocation8 + $0x98] sm:$0xff]
    %v202 = vld [vmem:[#allocation8 + $0xa0] sm:$0xff]
    %v203 = vld [vmem:[#allocation8 + $0xa8] sm:$0xff]
    %v204 = vld [vmem:[#allocation8 + $0xb0] sm:$0xff]
    %v205 = vld [vmem:[#allocation8 + $0xb8] sm:$0xff]
    %v206 = vld [vmem:[#allocation8 + $0xc0] sm:$0xff]
    %v207 = vld [vmem:[#allocation8 + $0xc8] sm:$0xff]
    %v208 = vld [vmem:[#allocation8 + $0xd0] sm:$0xff]
    %v209 = vld [vmem:[#allocation8 + $0xd8] sm:$0xff]
    %v210 = vld [vmem:[#allocation8 + $0xe0] sm:$0xff]
    %v211 = vld [vmem:[#allocation8 + $0xe8] sm:$0xff]
    %v212 = vld [vmem:[#allocation8 + $0xf0] sm:$0xff]
    %v213 = vld [vmem:[#allocation8 + $0xf8] sm:$0xff]
    %v214 = vld [vmem:[#allocation8 + $0x100] sm:$0xff]
    %v215 = vld [vmem:[#allocation8 + $0x108] sm:$0xff]
    %v216 = vld [vmem:[#allocation8 + $0x110] sm:$0xff]
    %v217 = vld [vmem:[#allocation8 + $0x118] sm:$0xff]
    %v218 = vld [vmem:[#allocation8 + $0x120] sm:$0xff]
    %v219 = vld [vmem:[#allocation8 + $0x128] sm:$0xff]
    %v220 = vld [vmem:[#allocation8 + $0x130] sm:$0xff]
    %v221 = vld [vmem:[#allocation8 + $0x138] sm:$0xff]
    %v222 = vld [vmem:[#allocation8 + $0x140] sm:$0xff]
    %v223 = vld [vmem:[#allocation8 + $0x148] sm:$0xff]
    %v224 = vld [vmem:[#allocation8 + $0x150] sm:$0xff]
    %v225 = vld [vmem:[#allocation8 + $0x158] sm:$0xff]
    %v226 = vld [vmem:[#allocation8 + $0x160] sm:$0xff]
    %v227 = vld [vmem:[#allocation8 + $0x168] sm:$0xff]
    %v228 = vld [vmem:[#allocation8 + $0x170] sm:$0xff]
    %v229 = vld [vmem:[#allocation8 + $0x178] sm:$0xff]
    %v230 = vld [vmem:[#allocation8 + $0x180] sm:$0xff]
    %v231 = vld [vmem:[#allocation8 + $0x188] sm:$0xff]
    %v232 = vld [vmem:[#allocation8 + $0x190] sm:$0xff]
    %v233 = vld [vmem:[#allocation8 + $0x198] sm:$0xff]
    %v234 = vld [vmem:[#allocation8 + $0x1a0] sm:$0xff]
    %v235 = vld [vmem:[#allocation8 + $0x1a8] sm:$0xff]
    %v236 = vld [vmem:[#allocation8 + $0x1b0] sm:$0xff]
    %v237 = vld [vmem:[#allocation8 + $0x1b8] sm:$0xff]
    %v238 = vld [vmem:[#allocation8 + $0x1c0] sm:$0xff]
    %v239 = vld [vmem:[#allocation8 + $0x1c8] sm:$0xff]
    %v240 = vld [vmem:[#allocation8 + $0x1d0] sm:$0xff]
    %v241 = vld [vmem:[#allocation8 + $0x1d8] sm:$0xff]
    %v242 = vld [vmem:[#allocation8 + $0x1e0] sm:$0xff]
    %v243 = vld [vmem:[#allocation8 + $0x1e8] sm:$0xff]
    %v244 = vld [vmem:[#allocation8 + $0x1f0] sm:$0xff]
    %v245 = vld [vmem:[#allocation8 + $0x1f8] sm:$0xff]
    %v246 = vld [vmem:[#allocation8 + $0x200] sm:$0xff]
    %v247 = vld [vmem:[#allocation8 + $0x208] sm:$0xff]
    %v248 = vld [vmem:[#allocation8 + $0x210] sm:$0xff]
    %v249 = vld [vmem:[#allocation8 + $0x218] sm:$0xff]
    %v250 = vld [vmem:[#allocation8 + $0x220] sm:$0xff]
    %v251 = vld [vmem:[#allocation8 + $0x228] sm:$0xff]
    %v252 = vld [vmem:[#allocation8 + $0x230] sm:$0xff]
    %v253 = vld [vmem:[#allocation8 + $0x238] sm:$0xff]
    %v254 = vld [vmem:[#allocation8 + $0x240] sm:$0xff]
    %v255 = vld [vmem:[#allocation8 + $0x248] sm:$0xff]
    %v256 = vld [vmem:[#allocation8 + $0x250] sm:$0xff]
    %v257 = vld [vmem:[#allocation8 + $0x258] sm:$0xff]
    %v258 = vld [vmem:[#allocation8 + $0x260] sm:$0xff]
    %v259 = vld [vmem:[#allocation8 + $0x268] sm:$0xff]
    %v260 = vld [vmem:[#allocation8 + $0x270] sm:$0xff]
    %v261 = vld [vmem:[#allocation8 + $0x278] sm:$0xff]
    %v262 = vld [vmem:[#allocation8 + $0x280] sm:$0xff]
    %v263 = vld [vmem:[#allocation8 + $0x288] sm:$0xff]
    %v264 = vld [vmem:[#allocation8 + $0x290] sm:$0xff]
    %v265 = vld [vmem:[#allocation8 + $0x298] sm:$0xff]
    %v266 = vld [vmem:[#allocation8 + $0x2a0] sm:$0xff]
    %v267 = vld [vmem:[#allocation8 + $0x2a8] sm:$0xff]
    %v268 = vld [vmem:[#allocation8 + $0x2b0] sm:$0xff]
    %v269 = vld [vmem:[#allocation8 + $0x2b8] sm:$0xff]
    %v270 = vld [vmem:[#allocation8 + $0x2c0] sm:$0xff]
    %v271 = vld [vmem:[#allocation8 + $0x2c8] sm:$0xff]
    %v272 = vld [vmem:[#allocation8 + $0x2d0] sm:$0xff]
    %v273 = vld [vmem:[#allocation8 + $0x2d8] sm:$0xff]
    %v274 = vld [vmem:[#allocation8 + $0x2e0] sm:$0xff]
    %v275 = vld [vmem:[#allocation8 + $0x2e8] sm:$0xff]
    %v276 = vld [vmem:[#allocation8 + $0x2f0] sm:$0xff]
    %v277 = vld [vmem:[#allocation8 + $0x2f8] sm:$0xff]
    %v278 = vld [vmem:[#allocation8 + $0x300] sm:$0xff]
    %v279 = vld [vmem:[#allocation8 + $0x308] sm:$0xff]
    %v280 = vld [vmem:[#allocation8 + $0x310] sm:$0xff]
    %v281 = vld [vmem:[#allocation8 + $0x318] sm:$0xff]
    %v282 = vld [vmem:[#allocation8 + $0x320] sm:$0xff]
    %v283 = vld [vmem:[#allocation8 + $0x328] sm:$0xff]
    %v284 = vld [vmem:[#allocation8 + $0x330] sm:$0xff]
    %v285 = vld [vmem:[#allocation8 + $0x338] sm:$0xff]
    %v286 = vld [vmem:[#allocation8 + $0x340] sm:$0xff]
    %v287 = vld [vmem:[#allocation8 + $0x348] sm:$0xff]
    %v288 = vld [vmem:[#allocation8 + $0x350] sm:$0xff]
    %v289 = vld [vmem:[#allocation8 + $0x358] sm:$0xff]
    %v290 = vld [vmem:[#allocation8 + $0x360] sm:$0xff]
    %v291 = vld [vmem:[#allocation8 + $0x368] sm:$0xff]
    %v292 = vld [vmem:[#allocation8 + $0x370] sm:$0xff]
    %v293 = vld [vmem:[#allocation8 + $0x378] sm:$0xff]
    %v294 = vld [vmem:[#allocation8 + $0x380] sm:$0xff]
    %v295 = vld [vmem:[#allocation8 + $0x388] sm:$0xff]
    %v296 = vld [vmem:[#allocation8 + $0x390] sm:$0xff]
    %v297 = vld [vmem:[#allocation8 + $0x398] sm:$0xff]
    %v298 = vld [vmem:[#allocation8 + $0x3a0] sm:$0xff]
    %v299 = vld [vmem:[#allocation8 + $0x3a8] sm:$0xff]
    %v300 = vld [vmem:[#allocation8 + $0x3b0] sm:$0xff]
    %v301 = vld [vmem:[#allocation8 + $0x3b8] sm:$0xff]
    %v302 = vld [vmem:[#allocation8 + $0x3c0] sm:$0xff]
    %v303 = vld [vmem:[#allocation8 + $0x3c8] sm:$0xff]
    %v304 = vld [vmem:[#allocation8 + $0x3d0] sm:$0xff]
    %v305 = vld [vmem:[#allocation8 + $0x3d8] sm:$0xff]
    %v306 = vld [vmem:[#allocation8 + $0x3e0] sm:$0xff]
    %v307 = vld [vmem:[#allocation8 + $0x3e8] sm:$0xff]
    %v308 = vld [vmem:[#allocation8 + $0x3f0] sm:$0xff]
    %v309 = vld [vmem:[#allocation8 + $0x3f8] sm:$0xff]
    %v310 = vld [vmem:[#allocation8 + $0x400] sm:$0xff]
    %v311 = vld [vmem:[#allocation8 + $0x408] sm:$0xff]
    %v312 = vld [vmem:[#allocation8 + $0x410] sm:$0xff]
    %v313 = vld [vmem:[#allocation8 + $0x418] sm:$0xff]
    %v314 = vld [vmem:[#allocation8 + $0x420] sm:$0xff]
    %v315 = vld [vmem:[#allocation8 + $0x428] sm:$0xff]
    %v316 = vld [vmem:[#allocation8 + $0x430] sm:$0xff]
    %v317 = vld [vmem:[#allocation8 + $0x438] sm:$0xff]
    %v318 = vld [vmem:[#allocation8 + $0x440] sm:$0xff]
    %v319 = vld [vmem:[#allocation8 + $0x448] sm:$0xff]
    %v320 = vld [vmem:[#allocation8 + $0x450] sm:$0xff]
    %v321 = vld [vmem:[#allocation8 + $0x458] sm:$0xff]
    %v322 = vld [vmem:[#allocation8 + $0x460] sm:$0xff]
    %v323 = vld [vmem:[#allocation8 + $0x468] sm:$0xff]
    %v324 = vld [vmem:[#allocation8 + $0x470] sm:$0xff]
    %v325 = vld [vmem:[#allocation8 + $0x478] sm:$0xff]
    %v326 = vld [vmem:[#allocation8 + $0x480] sm:$0xff]
    %v327 = vld [vmem:[#allocation8 + $0x488] sm:$0xff]
    %v328 = vld [vmem:[#allocation8 + $0x490] sm:$0xff]
    %v329 = vld [vmem:[#allocation8 + $0x498] sm:$0xff]
    %v330 = vld [vmem:[#allocation8 + $0x4a0] sm:$0xff]
    %v331 = vld [vmem:[#allocation8 + $0x4a8] sm:$0xff]
    %v332 = vld [vmem:[#allocation8 + $0x4b0] sm:$0xff]
    %v333 = vld [vmem:[#allocation8 + $0x4b8] sm:$0xff]
    %v334 = vld [vmem:[#allocation8 + $0x4c0] sm:$0xff]
    %v335 = vld [vmem:[#allocation8 + $0x4c8] sm:$0xff]
    %v336 = vld [vmem:[#allocation8 + $0x4d0] sm:$0xff]
    %v337 = vld [vmem:[#allocation8 + $0x4d8] sm:$0xff]
    %v338 = vld [vmem:[#allocation8 + $0x4e0] sm:$0xff]
    %v339 = vld [vmem:[#allocation8 + $0x4e8] sm:$0xff]
    %v340 = vld [vmem:[#allocation8 + $0x4f0] sm:$0xff]
    %v341 = vld [vmem:[#allocation8 + $0x4f8] sm:$0xff]
    %v342 = vld [vmem:[#allocation8 + $0x500] sm:$0xff]
    %v343 = vld [vmem:[#allocation8 + $0x508] sm:$0xff]
    %v344 = vld [vmem:[#allocation8 + $0x510] sm:$0xff]
    %v345 = vld [vmem:[#allocation8 + $0x518] sm:$0xff]
    %v346 = vld [vmem:[#allocation8 + $0x520] sm:$0xff]
    %v347 = vld [vmem:[#allocation8 + $0x528] sm:$0xff]
    %v348 = vld [vmem:[#allocation8 + $0x530] sm:$0xff]
    %v349 = vld [vmem:[#allocation8 + $0x538] sm:$0xff]
    %v350 = vld [vmem:[#allocation8 + $0x540] sm:$0xff]
    %v351 = vld [vmem:[#allocation8 + $0x548] sm:$0xff]
    %v352 = vld [vmem:[#allocation8 + $0x550] sm:$0xff]
    %v353 = vld [vmem:[#allocation8 + $0x558] sm:$0xff]
    %v354 = vld [vmem:[#allocation8 + $0x560] sm:$0xff]
    %v355 = vld [vmem:[#allocation8 + $0x568] sm:$0xff]
    %v356 = vld [vmem:[#allocation8 + $0x570] sm:$0xff]
    %v357 = vld [vmem:[#allocation8 + $0x578] sm:$0xff]
    %v358 = vld [vmem:[#allocation8 + $0x580] sm:$0xff]
    %v359 = vld [vmem:[#allocation8 + $0x588] sm:$0xff]
    %v360 = vld [vmem:[#allocation8 + $0x590] sm:$0xff]
    %v361 = vld [vmem:[#allocation8 + $0x598] sm:$0xff]
    %v362 = vld [vmem:[#allocation8 + $0x5a0] sm:$0xff]
    %v363 = vld [vmem:[#allocation8 + $0x5a8] sm:$0xff]
    %v364 = vld [vmem:[#allocation8 + $0x5b0] sm:$0xff]
    %v365 = vld [vmem:[#allocation8 + $0x5b8] sm:$0xff]
    %v366 = vld [vmem:[#allocation8 + $0x5c0] sm:$0xff]
    %v367 = vld [vmem:[#allocation8 + $0x5c8] sm:$0xff]
    %v368 = vld [vmem:[#allocation8 + $0x5d0] sm:$0xff]
    %v369 = vld [vmem:[#allocation8 + $0x5d8] sm:$0xff]
    %v370 = vld [vmem:[#allocation8 + $0x5e0] sm:$0xff]
    %v371 = vld [vmem:[#allocation8 + $0x5e8] sm:$0xff]
    %v372 = vld [vmem:[#allocation8 + $0x5f0] sm:$0xff]
    %v373 = vld [vmem:[#allocation8 + $0x5f8] sm:$0xff]
    %v374 = vld [vmem:[#allocation8 + $0x600] sm:$0xff]
    %v375 = vld [vmem:[#allocation8 + $0x608] sm:$0xff]
    %v376 = vld [vmem:[#allocation8 + $0x610] sm:$0xff]
    %v377 = vld [vmem:[#allocation8 + $0x618] sm:$0xff]
    %v378 = vld [vmem:[#allocation8 + $0x620] sm:$0xff]
    %v379 = vld [vmem:[#allocation8 + $0x628] sm:$0xff]
    %v380 = vld [vmem:[#allocation8 + $0x630] sm:$0xff]
    %v381 = vld [vmem:[#allocation8 + $0x638] sm:$0xff]
    %v382 = vld [vmem:[#allocation8 + $0x640] sm:$0xff]
    %v383 = vld [vmem:[#allocation8 + $0x648] sm:$0xff]
    %v384 = vld [vmem:[#allocation8 + $0x650] sm:$0xff]
    %v385 = vld [vmem:[#allocation8 + $0x658] sm:$0xff]
    %v386 = vld [vmem:[#allocation8 + $0x660] sm:$0xff]
    %v387 = vld [vmem:[#allocation8 + $0x668] sm:$0xff]
    %v388 = vld [vmem:[#allocation8 + $0x670] sm:$0xff]
    %v389 = vld [vmem:[#allocation8 + $0x678] sm:$0xff]
    %v390 = vld [vmem:[#allocation8 + $0x680] sm:$0xff]
    %v391 = vld [vmem:[#allocation8 + $0x688] sm:$0xff]
    %v392 = vld [vmem:[#allocation8 + $0x690] sm:$0xff]
    %v393 = vld [vmem:[#allocation8 + $0x698] sm:$0xff]
    %v394 = vld [vmem:[#allocation8 + $0x6a0] sm:$0xff]
    %v395 = vld [vmem:[#allocation8 + $0x6a8] sm:$0xff]
    %v396 = vld [vmem:[#allocation8 + $0x6b0] sm:$0xff]
    %v397 = vld [vmem:[#allocation8 + $0x6b8] sm:$0xff]
    %v398 = vld [vmem:[#allocation8 + $0x6c0] sm:$0xff]
    %v399 = vld [vmem:[#allocation8 + $0x6c8] sm:$0xff]
    %v400 = vld [vmem:[#allocation8 + $0x6d0] sm:$0xff]
    %v401 = vld [vmem:[#allocation8 + $0x6d8] sm:$0xff]
    %v402 = vld [vmem:[#allocation8 + $0x6e0] sm:$0xff]
    %v403 = vld [vmem:[#allocation8 + $0x6e8] sm:$0xff]
    %v404 = vld [vmem:[#allocation8 + $0x6f0] sm:$0xff]
    %v405 = vld [vmem:[#allocation8 + $0x6f8] sm:$0xff]
    %v406 = vld [vmem:[#allocation8 + $0x700] sm:$0xff]
    %v407 = vld [vmem:[#allocation8 + $0x708] sm:$0xff]
    %v408 = vld [vmem:[#allocation8 + $0x710] sm:$0xff]
    %v409 = vld [vmem:[#allocation8 + $0x718] sm:$0xff]
    %v410 = vld [vmem:[#allocation8 + $0x720] sm:$0xff]
    %v411 = vld [vmem:[#allocation8 + $0x728] sm:$0xff]
    %v412 = vld [vmem:[#allocation8 + $0x730] sm:$0xff]
    %v413 = vld [vmem:[#allocation8 + $0x738] sm:$0xff]
    %v414 = vld [vmem:[#allocation8 + $0x740] sm:$0xff]
    %v415 = vld [vmem:[#allocation8 + $0x748] sm:$0xff]
    %v416 = vld [vmem:[#allocation8 + $0x750] sm:$0xff]
    %v417 = vld [vmem:[#allocation8 + $0x758] sm:$0xff]
    %v418 = vld [vmem:[#allocation8 + $0x760] sm:$0xff]
    %v419 = vld [vmem:[#allocation8 + $0x768] sm:$0xff]
    %v420 = vld [vmem:[#allocation8 + $0x770] sm:$0xff]
    %v421 = vld [vmem:[#allocation8 + $0x778] sm:$0xff]
    %v422 = vld [vmem:[#allocation8 + $0x780] sm:$0xff]
    %v423 = vld [vmem:[#allocation8 + $0x788] sm:$0xff]
    %v424 = vld [vmem:[#allocation8 + $0x790] sm:$0xff]
    %v425 = vld [vmem:[#allocation8 + $0x798] sm:$0xff]
    %v426 = vld [vmem:[#allocation8 + $0x7a0] sm:$0xff]
    %v427 = vld [vmem:[#allocation8 + $0x7a8] sm:$0xff]
    %v428 = vld [vmem:[#allocation8 + $0x7b0] sm:$0xff]
    %v429 = vld [vmem:[#allocation8 + $0x7b8] sm:$0xff]
    %v430 = vld [vmem:[#allocation8 + $0x7c0] sm:$0xff]
    %v431 = vld [vmem:[#allocation8 + $0x7c8] sm:$0xff]
    %v432 = vld [vmem:[#allocation8 + $0x7d0] sm:$0xff]
    %v433 = vld [vmem:[#allocation8 + $0x7d8] sm:$0xff]
    %v434 = vld [vmem:[#allocation8 + $0x7e0] sm:$0xff]
    %v435 = vld [vmem:[#allocation8 + $0x7e8] sm:$0xff]
    %v436 = vld [vmem:[#allocation8 + $0x7f0] sm:$0xff]
    %v437 = vld [vmem:[#allocation8 + $0x7f8] sm:$0xff]
    %v438 = vld [vmem:[%s4] sm:$0xf]
    %v440 = vlaneseq
    %v441 = vshrl.u32 %v440, 7
    %v442 = vsub.s32 0, %v441
    %v443 = vrot.slane %v438, %v442
    %v444 = vlaneseq
    %v445 = vshrl.u32 %v444, 7
    %v446 = vsub.s32 1, %v445
    %v447 = vrot.slane %v438, %v446
    %v448 = vlaneseq
    %v449 = vshrl.u32 %v448, 7
    %v450 = vsub.s32 2, %v449
    %v451 = vrot.slane %v438, %v450
    %v452 = vlaneseq
    %v453 = vshrl.u32 %v452, 7
    %v454 = vsub.s32 3, %v453
    %v455 = vrot.slane %v438, %v454
    %v716 = vunpack.c.l.b16 %v182
    %v717 = vunpack.c.h.b16 %v182
    %v718 = vunpack.c.l.b16 %v183
    %v719 = vunpack.c.h.b16 %v183
    %v720 = vunpack.c.l.b16 %v184
    %v721 = vunpack.c.h.b16 %v184
    %v722 = vunpack.c.l.b16 %v185
    %v723 = vunpack.c.h.b16 %v185
    %v724 = vunpack.c.l.b16 %v186
    %v725 = vunpack.c.h.b16 %v186
    %v726 = vunpack.c.l.b16 %v187
    %v727 = vunpack.c.h.b16 %v187
    %v728 = vunpack.c.l.b16 %v188
    %v729 = vunpack.c.h.b16 %v188
    %v730 = vunpack.c.l.b16 %v189
    %v731 = vunpack.c.h.b16 %v189
    %v732 = vunpack.c.l.b16 %v190
    %v733 = vunpack.c.h.b16 %v190
    %v734 = vunpack.c.l.b16 %v191
    %v735 = vunpack.c.h.b16 %v191
    %v736 = vunpack.c.l.b16 %v192
    %v737 = vunpack.c.h.b16 %v192
    %v738 = vunpack.c.l.b16 %v193
    %v739 = vunpack.c.h.b16 %v193
    %v740 = vunpack.c.l.b16 %v194
    %v741 = vunpack.c.h.b16 %v194
    %v742 = vunpack.c.l.b16 %v195
    %v743 = vunpack.c.h.b16 %v195
    %v744 = vunpack.c.l.b16 %v196
    %v745 = vunpack.c.h.b16 %v196
    %v746 = vunpack.c.l.b16 %v197
    %v747 = vunpack.c.h.b16 %v197
    %v748 = vunpack.c.l.b16 %v198
    %v749 = vunpack.c.h.b16 %v198
    %v750 = vunpack.c.l.b16 %v199
    %v751 = vunpack.c.h.b16 %v199
    %v752 = vunpack.c.l.b16 %v200
    %v753 = vunpack.c.h.b16 %v200
    %v754 = vunpack.c.l.b16 %v201
    %v755 = vunpack.c.h.b16 %v201
    %v756 = vunpack.c.l.b16 %v202
    %v757 = vunpack.c.h.b16 %v202
    %v758 = vunpack.c.l.b16 %v203
    %v759 = vunpack.c.h.b16 %v203
    %v760 = vunpack.c.l.b16 %v204
    %v761 = vunpack.c.h.b16 %v204
    %v762 = vunpack.c.l.b16 %v205
    %v763 = vunpack.c.h.b16 %v205
    %v764 = vunpack.c.l.b16 %v206
    %v765 = vunpack.c.h.b16 %v206
    %v766 = vunpack.c.l.b16 %v207
    %v767 = vunpack.c.h.b16 %v207
    %v768 = vunpack.c.l.b16 %v208
    %v769 = vunpack.c.h.b16 %v208
    %v770 = vunpack.c.l.b16 %v209
    %v771 = vunpack.c.h.b16 %v209
    %v772 = vunpack.c.l.b16 %v210
    %v773 = vunpack.c.h.b16 %v210
    %v774 = vunpack.c.l.b16 %v211
    %v775 = vunpack.c.h.b16 %v211
    %v776 = vunpack.c.l.b16 %v212
    %v777 = vunpack.c.h.b16 %v212
    %v778 = vunpack.c.l.b16 %v213
    %v779 = vunpack.c.h.b16 %v213
    %v780 = vunpack.c.l.b16 %v214
    %v781 = vunpack.c.h.b16 %v214
    %v782 = vunpack.c.l.b16 %v215
    %v783 = vunpack.c.h.b16 %v215
    %v784 = vunpack.c.l.b16 %v216
    %v785 = vunpack.c.h.b16 %v216
    %v786 = vunpack.c.l.b16 %v217
    %v787 = vunpack.c.h.b16 %v217
    %v788 = vunpack.c.l.b16 %v218
    %v789 = vunpack.c.h.b16 %v218
    %v790 = vunpack.c.l.b16 %v219
    %v791 = vunpack.c.h.b16 %v219
    %v792 = vunpack.c.l.b16 %v220
    %v793 = vunpack.c.h.b16 %v220
    %v794 = vunpack.c.l.b16 %v221
    %v795 = vunpack.c.h.b16 %v221
    %v796 = vunpack.c.l.b16 %v222
    %v797 = vunpack.c.h.b16 %v222
    %v798 = vunpack.c.l.b16 %v223
    %v799 = vunpack.c.h.b16 %v223
    %v800 = vunpack.c.l.b16 %v224
    %v801 = vunpack.c.h.b16 %v224
    %v802 = vunpack.c.l.b16 %v225
    %v803 = vunpack.c.h.b16 %v225
    %v804 = vunpack.c.l.b16 %v226
    %v805 = vunpack.c.h.b16 %v226
    %v806 = vunpack.c.l.b16 %v227
    %v807 = vunpack.c.h.b16 %v227
    %v808 = vunpack.c.l.b16 %v228
    %v809 = vunpack.c.h.b16 %v228
    %v810 = vunpack.c.l.b16 %v229
    %v811 = vunpack.c.h.b16 %v229
    %v812 = vunpack.c.l.b16 %v230
    %v813 = vunpack.c.h.b16 %v230
    %v814 = vunpack.c.l.b16 %v231
    %v815 = vunpack.c.h.b16 %v231
    %v816 = vunpack.c.l.b16 %v232
    %v817 = vunpack.c.h.b16 %v232
    %v818 = vunpack.c.l.b16 %v233
    %v819 = vunpack.c.h.b16 %v233
    %v820 = vunpack.c.l.b16 %v234
    %v821 = vunpack.c.h.b16 %v234
    %v822 = vunpack.c.l.b16 %v235
    %v823 = vunpack.c.h.b16 %v235
    %v824 = vunpack.c.l.b16 %v236
    %v825 = vunpack.c.h.b16 %v236
    %v826 = vunpack.c.l.b16 %v237
    %v827 = vunpack.c.h.b16 %v237
    %v828 = vunpack.c.l.b16 %v238
    %v829 = vunpack.c.h.b16 %v238
    %v830 = vunpack.c.l.b16 %v239
    %v831 = vunpack.c.h.b16 %v239
    %v832 = vunpack.c.l.b16 %v240
    %v833 = vunpack.c.h.b16 %v240
    %v834 = vunpack.c.l.b16 %v241
    %v835 = vunpack.c.h.b16 %v241
    %v836 = vunpack.c.l.b16 %v242
    %v837 = vunpack.c.h.b16 %v242
    %v838 = vunpack.c.l.b16 %v243
    %v839 = vunpack.c.h.b16 %v243
    %v840 = vunpack.c.l.b16 %v244
    %v841 = vunpack.c.h.b16 %v244
    %v842 = vunpack.c.l.b16 %v245
    %v843 = vunpack.c.h.b16 %v245
    %v844 = vunpack.c.l.b16 %v246
    %v845 = vunpack.c.h.b16 %v246
    %v846 = vunpack.c.l.b16 %v247
    %v847 = vunpack.c.h.b16 %v247
    %v848 = vunpack.c.l.b16 %v248
    %v849 = vunpack.c.h.b16 %v248
    %v850 = vunpack.c.l.b16 %v249
    %v851 = vunpack.c.h.b16 %v249
    %v852 = vunpack.c.l.b16 %v250
    %v853 = vunpack.c.h.b16 %v250
    %v854 = vunpack.c.l.b16 %v251
    %v855 = vunpack.c.h.b16 %v251
    %v856 = vunpack.c.l.b16 %v252
    %v857 = vunpack.c.h.b16 %v252
    %v858 = vunpack.c.l.b16 %v253
    %v859 = vunpack.c.h.b16 %v253
    %v860 = vunpack.c.l.b16 %v254
    %v861 = vunpack.c.h.b16 %v254
    %v862 = vunpack.c.l.b16 %v255
    %v863 = vunpack.c.h.b16 %v255
    %v864 = vunpack.c.l.b16 %v256
    %v865 = vunpack.c.h.b16 %v256
    %v866 = vunpack.c.l.b16 %v257
    %v867 = vunpack.c.h.b16 %v257
    %v868 = vunpack.c.l.b16 %v258
    %v869 = vunpack.c.h.b16 %v258
    %v870 = vunpack.c.l.b16 %v259
    %v871 = vunpack.c.h.b16 %v259
    %v872 = vunpack.c.l.b16 %v260
    %v873 = vunpack.c.h.b16 %v260
    %v874 = vunpack.c.l.b16 %v261
    %v875 = vunpack.c.h.b16 %v261
    %v876 = vunpack.c.l.b16 %v262
    %v877 = vunpack.c.h.b16 %v262
    %v878 = vunpack.c.l.b16 %v263
    %v879 = vunpack.c.h.b16 %v263
    %v880 = vunpack.c.l.b16 %v264
    %v881 = vunpack.c.h.b16 %v264
    %v882 = vunpack.c.l.b16 %v265
    %v883 = vunpack.c.h.b16 %v265
    %v884 = vunpack.c.l.b16 %v266
    %v885 = vunpack.c.h.b16 %v266
    %v886 = vunpack.c.l.b16 %v267
    %v887 = vunpack.c.h.b16 %v267
    %v888 = vunpack.c.l.b16 %v268
    %v889 = vunpack.c.h.b16 %v268
    %v890 = vunpack.c.l.b16 %v269
    %v891 = vunpack.c.h.b16 %v269
    %v892 = vunpack.c.l.b16 %v270
    %v893 = vunpack.c.h.b16 %v270
    %v894 = vunpack.c.l.b16 %v271
    %v895 = vunpack.c.h.b16 %v271
    %v896 = vunpack.c.l.b16 %v272
    %v897 = vunpack.c.h.b16 %v272
    %v898 = vunpack.c.l.b16 %v273
    %v899 = vunpack.c.h.b16 %v273
    %v900 = vunpack.c.l.b16 %v274
    %v901 = vunpack.c.h.b16 %v274
    %v902 = vunpack.c.l.b16 %v275
    %v903 = vunpack.c.h.b16 %v275
    %v904 = vunpack.c.l.b16 %v276
    %v905 = vunpack.c.h.b16 %v276
    %v906 = vunpack.c.l.b16 %v277
    %v907 = vunpack.c.h.b16 %v277
    %v908 = vunpack.c.l.b16 %v278
    %v909 = vunpack.c.h.b16 %v278
    %v910 = vunpack.c.l.b16 %v279
    %v911 = vunpack.c.h.b16 %v279
    %v912 = vunpack.c.l.b16 %v280
    %v913 = vunpack.c.h.b16 %v280
    %v914 = vunpack.c.l.b16 %v281
    %v915 = vunpack.c.h.b16 %v281
    %v916 = vunpack.c.l.b16 %v282
    %v917 = vunpack.c.h.b16 %v282
    %v918 = vunpack.c.l.b16 %v283
    %v919 = vunpack.c.h.b16 %v283
    %v920 = vunpack.c.l.b16 %v284
    %v921 = vunpack.c.h.b16 %v284
    %v922 = vunpack.c.l.b16 %v285
    %v923 = vunpack.c.h.b16 %v285
    %v924 = vunpack.c.l.b16 %v286
    %v925 = vunpack.c.h.b16 %v286
    %v926 = vunpack.c.l.b16 %v287
    %v927 = vunpack.c.h.b16 %v287
    %v928 = vunpack.c.l.b16 %v288
    %v929 = vunpack.c.h.b16 %v288
    %v930 = vunpack.c.l.b16 %v289
    %v931 = vunpack.c.h.b16 %v289
    %v932 = vunpack.c.l.b16 %v290
    %v933 = vunpack.c.h.b16 %v290
    %v934 = vunpack.c.l.b16 %v291
    %v935 = vunpack.c.h.b16 %v291
    %v936 = vunpack.c.l.b16 %v292
    %v937 = vunpack.c.h.b16 %v292
    %v938 = vunpack.c.l.b16 %v293
    %v939 = vunpack.c.h.b16 %v293
    %v940 = vunpack.c.l.b16 %v294
    %v941 = vunpack.c.h.b16 %v294
    %v942 = vunpack.c.l.b16 %v295
    %v943 = vunpack.c.h.b16 %v295
    %v944 = vunpack.c.l.b16 %v296
    %v945 = vunpack.c.h.b16 %v296
    %v946 = vunpack.c.l.b16 %v297
    %v947 = vunpack.c.h.b16 %v297
    %v948 = vunpack.c.l.b16 %v298
    %v949 = vunpack.c.h.b16 %v298
    %v950 = vunpack.c.l.b16 %v299
    %v951 = vunpack.c.h.b16 %v299
    %v952 = vunpack.c.l.b16 %v300
    %v953 = vunpack.c.h.b16 %v300
    %v954 = vunpack.c.l.b16 %v301
    %v955 = vunpack.c.h.b16 %v301
    %v956 = vunpack.c.l.b16 %v302
    %v957 = vunpack.c.h.b16 %v302
    %v958 = vunpack.c.l.b16 %v303
    %v959 = vunpack.c.h.b16 %v303
    %v960 = vunpack.c.l.b16 %v304
    %v961 = vunpack.c.h.b16 %v304
    %v962 = vunpack.c.l.b16 %v305
    %v963 = vunpack.c.h.b16 %v305
    %v964 = vunpack.c.l.b16 %v306
    %v965 = vunpack.c.h.b16 %v306
    %v966 = vunpack.c.l.b16 %v307
    %v967 = vunpack.c.h.b16 %v307
    %v968 = vunpack.c.l.b16 %v308
    %v969 = vunpack.c.h.b16 %v308
    %v970 = vunpack.c.l.b16 %v309
    %v971 = vunpack.c.h.b16 %v309
    %v972 = vunpack.c.l.b16 %v310
    %v973 = vunpack.c.h.b16 %v310
    %v974 = vunpack.c.l.b16 %v311
    %v975 = vunpack.c.h.b16 %v311
    %v976 = vunpack.c.l.b16 %v312
    %v977 = vunpack.c.h.b16 %v312
    %v978 = vunpack.c.l.b16 %v313
    %v979 = vunpack.c.h.b16 %v313
    %v980 = vunpack.c.l.b16 %v314
    %v981 = vunpack.c.h.b16 %v314
    %v982 = vunpack.c.l.b16 %v315
    %v983 = vunpack.c.h.b16 %v315
    %v984 = vunpack.c.l.b16 %v316
    %v985 = vunpack.c.h.b16 %v316
    %v986 = vunpack.c.l.b16 %v317
    %v987 = vunpack.c.h.b16 %v317
    %v988 = vunpack.c.l.b16 %v318
    %v989 = vunpack.c.h.b16 %v318
    %v990 = vunpack.c.l.b16 %v319
    %v991 = vunpack.c.h.b16 %v319
    %v992 = vunpack.c.l.b16 %v320
    %v993 = vunpack.c.h.b16 %v320
    %v994 = vunpack.c.l.b16 %v321
    %v995 = vunpack.c.h.b16 %v321
    %v996 = vunpack.c.l.b16 %v322
    %v997 = vunpack.c.h.b16 %v322
    %v998 = vunpack.c.l.b16 %v323
    %v999 = vunpack.c.h.b16 %v323
    %v1000 = vunpack.c.l.b16 %v324
    %v1001 = vunpack.c.h.b16 %v324
    %v1002 = vunpack.c.l.b16 %v325
    %v1003 = vunpack.c.h.b16 %v325
    %v1004 = vunpack.c.l.b16 %v326
    %v1005 = vunpack.c.h.b16 %v326
    %v1006 = vunpack.c.l.b16 %v327
    %v1007 = vunpack.c.h.b16 %v327
    %v1008 = vunpack.c.l.b16 %v328
    %v1009 = vunpack.c.h.b16 %v328
    %v1010 = vunpack.c.l.b16 %v329
    %v1011 = vunpack.c.h.b16 %v329
    %v1012 = vunpack.c.l.b16 %v330
    %v1013 = vunpack.c.h.b16 %v330
    %v1014 = vunpack.c.l.b16 %v331
    %v1015 = vunpack.c.h.b16 %v331
    %v1016 = vunpack.c.l.b16 %v332
    %v1017 = vunpack.c.h.b16 %v332
    %v1018 = vunpack.c.l.b16 %v333
    %v1019 = vunpack.c.h.b16 %v333
    %v1020 = vunpack.c.l.b16 %v334
    %v1021 = vunpack.c.h.b16 %v334
    %v1022 = vunpack.c.l.b16 %v335
    %v1023 = vunpack.c.h.b16 %v335
    %v1024 = vunpack.c.l.b16 %v336
    %v1025 = vunpack.c.h.b16 %v336
    %v1026 = vunpack.c.l.b16 %v337
    %v1027 = vunpack.c.h.b16 %v337
    %v1028 = vunpack.c.l.b16 %v338
    %v1029 = vunpack.c.h.b16 %v338
    %v1030 = vunpack.c.l.b16 %v339
    %v1031 = vunpack.c.h.b16 %v339
    %v1032 = vunpack.c.l.b16 %v340
    %v1033 = vunpack.c.h.b16 %v340
    %v1034 = vunpack.c.l.b16 %v341
    %v1035 = vunpack.c.h.b16 %v341
    %v1036 = vunpack.c.l.b16 %v342
    %v1037 = vunpack.c.h.b16 %v342
    %v1038 = vunpack.c.l.b16 %v343
    %v1039 = vunpack.c.h.b16 %v343
    %v1040 = vunpack.c.l.b16 %v344
    %v1041 = vunpack.c.h.b16 %v344
    %v1042 = vunpack.c.l.b16 %v345
    %v1043 = vunpack.c.h.b16 %v345
    %v1044 = vunpack.c.l.b16 %v346
    %v1045 = vunpack.c.h.b16 %v346
    %v1046 = vunpack.c.l.b16 %v347
    %v1047 = vunpack.c.h.b16 %v347
    %v1048 = vunpack.c.l.b16 %v348
    %v1049 = vunpack.c.h.b16 %v348
    %v1050 = vunpack.c.l.b16 %v349
    %v1051 = vunpack.c.h.b16 %v349
    %v1052 = vunpack.c.l.b16 %v350
    %v1053 = vunpack.c.h.b16 %v350
    %v1054 = vunpack.c.l.b16 %v351
    %v1055 = vunpack.c.h.b16 %v351
    %v1056 = vunpack.c.l.b16 %v352
    %v1057 = vunpack.c.h.b16 %v352
    %v1058 = vunpack.c.l.b16 %v353
    %v1059 = vunpack.c.h.b16 %v353
    %v1060 = vunpack.c.l.b16 %v354
    %v1061 = vunpack.c.h.b16 %v354
    %v1062 = vunpack.c.l.b16 %v355
    %v1063 = vunpack.c.h.b16 %v355
    %v1064 = vunpack.c.l.b16 %v356
    %v1065 = vunpack.c.h.b16 %v356
    %v1066 = vunpack.c.l.b16 %v357
    %v1067 = vunpack.c.h.b16 %v357
    %v1068 = vunpack.c.l.b16 %v358
    %v1069 = vunpack.c.h.b16 %v358
    %v1070 = vunpack.c.l.b16 %v359
    %v1071 = vunpack.c.h.b16 %v359
    %v1072 = vunpack.c.l.b16 %v360
    %v1073 = vunpack.c.h.b16 %v360
    %v1074 = vunpack.c.l.b16 %v361
    %v1075 = vunpack.c.h.b16 %v361
    %v1076 = vunpack.c.l.b16 %v362
    %v1077 = vunpack.c.h.b16 %v362
    %v1078 = vunpack.c.l.b16 %v363
    %v1079 = vunpack.c.h.b16 %v363
    %v1080 = vunpack.c.l.b16 %v364
    %v1081 = vunpack.c.h.b16 %v364
    %v1082 = vunpack.c.l.b16 %v365
    %v1083 = vunpack.c.h.b16 %v365
    %v1084 = vunpack.c.l.b16 %v366
    %v1085 = vunpack.c.h.b16 %v366
    %v1086 = vunpack.c.l.b16 %v367
    %v1087 = vunpack.c.h.b16 %v367
    %v1088 = vunpack.c.l.b16 %v368
    %v1089 = vunpack.c.h.b16 %v368
    %v1090 = vunpack.c.l.b16 %v369
    %v1091 = vunpack.c.h.b16 %v369
    %v1092 = vunpack.c.l.b16 %v370
    %v1093 = vunpack.c.h.b16 %v370
    %v1094 = vunpack.c.l.b16 %v371
    %v1095 = vunpack.c.h.b16 %v371
    %v1096 = vunpack.c.l.b16 %v372
    %v1097 = vunpack.c.h.b16 %v372
    %v1098 = vunpack.c.l.b16 %v373
    %v1099 = vunpack.c.h.b16 %v373
    %v1100 = vunpack.c.l.b16 %v374
    %v1101 = vunpack.c.h.b16 %v374
    %v1102 = vunpack.c.l.b16 %v375
    %v1103 = vunpack.c.h.b16 %v375
    %v1104 = vunpack.c.l.b16 %v376
    %v1105 = vunpack.c.h.b16 %v376
    %v1106 = vunpack.c.l.b16 %v377
    %v1107 = vunpack.c.h.b16 %v377
    %v1108 = vunpack.c.l.b16 %v378
    %v1109 = vunpack.c.h.b16 %v378
    %v1110 = vunpack.c.l.b16 %v379
    %v1111 = vunpack.c.h.b16 %v379
    %v1112 = vunpack.c.l.b16 %v380
    %v1113 = vunpack.c.h.b16 %v380
    %v1114 = vunpack.c.l.b16 %v381
    %v1115 = vunpack.c.h.b16 %v381
    %v1116 = vunpack.c.l.b16 %v382
    %v1117 = vunpack.c.h.b16 %v382
    %v1118 = vunpack.c.l.b16 %v383
    %v1119 = vunpack.c.h.b16 %v383
    %v1120 = vunpack.c.l.b16 %v384
    %v1121 = vunpack.c.h.b16 %v384
    %v1122 = vunpack.c.l.b16 %v385
    %v1123 = vunpack.c.h.b16 %v385
    %v1124 = vunpack.c.l.b16 %v386
    %v1125 = vunpack.c.h.b16 %v386
    %v1126 = vunpack.c.l.b16 %v387
    %v1127 = vunpack.c.h.b16 %v387
    %v1128 = vunpack.c.l.b16 %v388
    %v1129 = vunpack.c.h.b16 %v388
    %v1130 = vunpack.c.l.b16 %v389
    %v1131 = vunpack.c.h.b16 %v389
    %v1132 = vunpack.c.l.b16 %v390
    %v1133 = vunpack.c.h.b16 %v390
    %v1134 = vunpack.c.l.b16 %v391
    %v1135 = vunpack.c.h.b16 %v391
    %v1136 = vunpack.c.l.b16 %v392
    %v1137 = vunpack.c.h.b16 %v392
    %v1138 = vunpack.c.l.b16 %v393
    %v1139 = vunpack.c.h.b16 %v393
    %v1140 = vunpack.c.l.b16 %v394
    %v1141 = vunpack.c.h.b16 %v394
    %v1142 = vunpack.c.l.b16 %v395
    %v1143 = vunpack.c.h.b16 %v395
    %v1144 = vunpack.c.l.b16 %v396
    %v1145 = vunpack.c.h.b16 %v396
    %v1146 = vunpack.c.l.b16 %v397
    %v1147 = vunpack.c.h.b16 %v397
    %v1148 = vunpack.c.l.b16 %v398
    %v1149 = vunpack.c.h.b16 %v398
    %v1150 = vunpack.c.l.b16 %v399
    %v1151 = vunpack.c.h.b16 %v399
    %v1152 = vunpack.c.l.b16 %v400
    %v1153 = vunpack.c.h.b16 %v400
    %v1154 = vunpack.c.l.b16 %v401
    %v1155 = vunpack.c.h.b16 %v401
    %v1156 = vunpack.c.l.b16 %v402
    %v1157 = vunpack.c.h.b16 %v402
    %v1158 = vunpack.c.l.b16 %v403
    %v1159 = vunpack.c.h.b16 %v403
    %v1160 = vunpack.c.l.b16 %v404
    %v1161 = vunpack.c.h.b16 %v404
    %v1162 = vunpack.c.l.b16 %v405
    %v1163 = vunpack.c.h.b16 %v405
    %v1164 = vunpack.c.l.b16 %v406
    %v1165 = vunpack.c.h.b16 %v406
    %v1166 = vunpack.c.l.b16 %v407
    %v1167 = vunpack.c.h.b16 %v407
    %v1168 = vunpack.c.l.b16 %v408
    %v1169 = vunpack.c.h.b16 %v408
    %v1170 = vunpack.c.l.b16 %v409
    %v1171 = vunpack.c.h.b16 %v409
    %v1172 = vunpack.c.l.b16 %v410
    %v1173 = vunpack.c.h.b16 %v410
    %v1174 = vunpack.c.l.b16 %v411
    %v1175 = vunpack.c.h.b16 %v411
    %v1176 = vunpack.c.l.b16 %v412
    %v1177 = vunpack.c.h.b16 %v412
    %v1178 = vunpack.c.l.b16 %v413
    %v1179 = vunpack.c.h.b16 %v413
    %v1180 = vunpack.c.l.b16 %v414
    %v1181 = vunpack.c.h.b16 %v414
    %v1182 = vunpack.c.l.b16 %v415
    %v1183 = vunpack.c.h.b16 %v415
    %v1184 = vunpack.c.l.b16 %v416
    %v1185 = vunpack.c.h.b16 %v416
    %v1186 = vunpack.c.l.b16 %v417
    %v1187 = vunpack.c.h.b16 %v417
    %v1188 = vunpack.c.l.b16 %v418
    %v1189 = vunpack.c.h.b16 %v418
    %v1190 = vunpack.c.l.b16 %v419
    %v1191 = vunpack.c.h.b16 %v419
    %v1192 = vunpack.c.l.b16 %v420
    %v1193 = vunpack.c.h.b16 %v420
    %v1194 = vunpack.c.l.b16 %v421
    %v1195 = vunpack.c.h.b16 %v421
    %v1196 = vunpack.c.l.b16 %v422
    %v1197 = vunpack.c.h.b16 %v422
    %v1198 = vunpack.c.l.b16 %v423
    %v1199 = vunpack.c.h.b16 %v423
    %v1200 = vunpack.c.l.b16 %v424
    %v1201 = vunpack.c.h.b16 %v424
    %v1202 = vunpack.c.l.b16 %v425
    %v1203 = vunpack.c.h.b16 %v425
    %v1204 = vunpack.c.l.b16 %v426
    %v1205 = vunpack.c.h.b16 %v426
    %v1206 = vunpack.c.l.b16 %v427
    %v1207 = vunpack.c.h.b16 %v427
    %v1208 = vunpack.c.l.b16 %v428
    %v1209 = vunpack.c.h.b16 %v428
    %v1210 = vunpack.c.l.b16 %v429
    %v1211 = vunpack.c.h.b16 %v429
    %v1212 = vunpack.c.l.b16 %v430
    %v1213 = vunpack.c.h.b16 %v430
    %v1214 = vunpack.c.l.b16 %v431
    %v1215 = vunpack.c.h.b16 %v431
    %v1216 = vunpack.c.l.b16 %v432
    %v1217 = vunpack.c.h.b16 %v432
    %v1218 = vunpack.c.l.b16 %v433
    %v1219 = vunpack.c.h.b16 %v433
    %v1220 = vunpack.c.l.b16 %v434
    %v1221 = vunpack.c.h.b16 %v434
    %v1222 = vunpack.c.l.b16 %v435
    %v1223 = vunpack.c.h.b16 %v435
    %v1224 = vunpack.c.l.b16 %v436
    %v1225 = vunpack.c.h.b16 %v436
    %v1226 = vunpack.c.l.b16 %v437
    %v1227 = vunpack.c.h.b16 %v437
    %v1228 = vpack.c.b16 %v720, %v716
    %v1229 = vpack.c.b16 %v721, %v717
    %v1230 = vpack.c.b16 %v722, %v718
    %v1231 = vpack.c.b16 %v723, %v719
    %v1232 = vpack.c.b16 %v728, %v724
    %v1233 = vpack.c.b16 %v729, %v725
    %v1234 = vpack.c.b16 %v730, %v726
    %v1235 = vpack.c.b16 %v731, %v727
    %v1236 = vpack.c.b16 %v736, %v732
    %v1237 = vpack.c.b16 %v737, %v733
    %v1238 = vpack.c.b16 %v738, %v734
    %v1239 = vpack.c.b16 %v739, %v735
    %v1240 = vpack.c.b16 %v744, %v740
    %v1241 = vpack.c.b16 %v745, %v741
    %v1242 = vpack.c.b16 %v746, %v742
    %v1243 = vpack.c.b16 %v747, %v743
    %v1244 = vpack.c.b16 %v752, %v748
    %v1245 = vpack.c.b16 %v753, %v749
    %v1246 = vpack.c.b16 %v754, %v750
    %v1247 = vpack.c.b16 %v755, %v751
    %v1248 = vpack.c.b16 %v760, %v756
    %v1249 = vpack.c.b16 %v761, %v757
    %v1250 = vpack.c.b16 %v762, %v758
    %v1251 = vpack.c.b16 %v763, %v759
    %v1252 = vpack.c.b16 %v768, %v764
    %v1253 = vpack.c.b16 %v769, %v765
    %v1254 = vpack.c.b16 %v770, %v766
    %v1255 = vpack.c.b16 %v771, %v767
    %v1256 = vpack.c.b16 %v776, %v772
    %v1257 = vpack.c.b16 %v777, %v773
    %v1258 = vpack.c.b16 %v778, %v774
    %v1259 = vpack.c.b16 %v779, %v775
    %v1260 = vpack.c.b16 %v784, %v780
    %v1261 = vpack.c.b16 %v785, %v781
    %v1262 = vpack.c.b16 %v786, %v782
    %v1263 = vpack.c.b16 %v787, %v783
    %v1264 = vpack.c.b16 %v792, %v788
    %v1265 = vpack.c.b16 %v793, %v789
    %v1266 = vpack.c.b16 %v794, %v790
    %v1267 = vpack.c.b16 %v795, %v791
    %v1268 = vpack.c.b16 %v800, %v796
    %v1269 = vpack.c.b16 %v801, %v797
    %v1270 = vpack.c.b16 %v802, %v798
    %v1271 = vpack.c.b16 %v803, %v799
    %v1272 = vpack.c.b16 %v808, %v804
    %v1273 = vpack.c.b16 %v809, %v805
    %v1274 = vpack.c.b16 %v810, %v806
    %v1275 = vpack.c.b16 %v811, %v807
    %v1276 = vpack.c.b16 %v816, %v812
    %v1277 = vpack.c.b16 %v817, %v813
    %v1278 = vpack.c.b16 %v818, %v814
    %v1279 = vpack.c.b16 %v819, %v815
    %v1280 = vpack.c.b16 %v824, %v820
    %v1281 = vpack.c.b16 %v825, %v821
    %v1282 = vpack.c.b16 %v826, %v822
    %v1283 = vpack.c.b16 %v827, %v823
    %v1284 = vpack.c.b16 %v832, %v828
    %v1285 = vpack.c.b16 %v833, %v829
    %v1286 = vpack.c.b16 %v834, %v830
    %v1287 = vpack.c.b16 %v835, %v831
    %v1288 = vpack.c.b16 %v840, %v836
    %v1289 = vpack.c.b16 %v841, %v837
    %v1290 = vpack.c.b16 %v842, %v838
    %v1291 = vpack.c.b16 %v843, %v839
    %v1292 = vpack.c.b16 %v848, %v844
    %v1293 = vpack.c.b16 %v849, %v845
    %v1294 = vpack.c.b16 %v850, %v846
    %v1295 = vpack.c.b16 %v851, %v847
    %v1296 = vpack.c.b16 %v856, %v852
    %v1297 = vpack.c.b16 %v857, %v853
    %v1298 = vpack.c.b16 %v858, %v854
    %v1299 = vpack.c.b16 %v859, %v855
    %v1300 = vpack.c.b16 %v864, %v860
    %v1301 = vpack.c.b16 %v865, %v861
    %v1302 = vpack.c.b16 %v866, %v862
    %v1303 = vpack.c.b16 %v867, %v863
    %v1304 = vpack.c.b16 %v872, %v868
    %v1305 = vpack.c.b16 %v873, %v869
    %v1306 = vpack.c.b16 %v874, %v870
    %v1307 = vpack.c.b16 %v875, %v871
    %v1308 = vpack.c.b16 %v880, %v876
    %v1309 = vpack.c.b16 %v881, %v877
    %v1310 = vpack.c.b16 %v882, %v878
    %v1311 = vpack.c.b16 %v883, %v879
    %v1312 = vpack.c.b16 %v888, %v884
    %v1313 = vpack.c.b16 %v889, %v885
    %v1314 = vpack.c.b16 %v890, %v886
    %v1315 = vpack.c.b16 %v891, %v887
    %v1316 = vpack.c.b16 %v896, %v892
    %v1317 = vpack.c.b16 %v897, %v893
    %v1318 = vpack.c.b16 %v898, %v894
    %v1319 = vpack.c.b16 %v899, %v895
    %v1320 = vpack.c.b16 %v904, %v900
    %v1321 = vpack.c.b16 %v905, %v901
    %v1322 = vpack.c.b16 %v906, %v902
    %v1323 = vpack.c.b16 %v907, %v903
    %v1324 = vpack.c.b16 %v912, %v908
    %v1325 = vpack.c.b16 %v913, %v909
    %v1326 = vpack.c.b16 %v914, %v910
    %v1327 = vpack.c.b16 %v915, %v911
    %v1328 = vpack.c.b16 %v920, %v916
    %v1329 = vpack.c.b16 %v921, %v917
    %v1330 = vpack.c.b16 %v922, %v918
    %v1331 = vpack.c.b16 %v923, %v919
    %v1332 = vpack.c.b16 %v928, %v924
    %v1333 = vpack.c.b16 %v929, %v925
    %v1334 = vpack.c.b16 %v930, %v926
    %v1335 = vpack.c.b16 %v931, %v927
    %v1336 = vpack.c.b16 %v936, %v932
    %v1337 = vpack.c.b16 %v937, %v933
    %v1338 = vpack.c.b16 %v938, %v934
    %v1339 = vpack.c.b16 %v939, %v935
    %v1340 = vpack.c.b16 %v944, %v940
    %v1341 = vpack.c.b16 %v945, %v941
    %v1342 = vpack.c.b16 %v946, %v942
    %v1343 = vpack.c.b16 %v947, %v943
    %v1344 = vpack.c.b16 %v952, %v948
    %v1345 = vpack.c.b16 %v953, %v949
    %v1346 = vpack.c.b16 %v954, %v950
    %v1347 = vpack.c.b16 %v955, %v951
    %v1348 = vpack.c.b16 %v960, %v956
    %v1349 = vpack.c.b16 %v961, %v957
    %v1350 = vpack.c.b16 %v962, %v958
    %v1351 = vpack.c.b16 %v963, %v959
    %v1352 = vpack.c.b16 %v968, %v964
    %v1353 = vpack.c.b16 %v969, %v965
    %v1354 = vpack.c.b16 %v970, %v966
    %v1355 = vpack.c.b16 %v971, %v967
    %v1356 = vpack.c.b16 %v976, %v972
    %v1357 = vpack.c.b16 %v977, %v973
    %v1358 = vpack.c.b16 %v978, %v974
    %v1359 = vpack.c.b16 %v979, %v975
    %v1360 = vpack.c.b16 %v984, %v980
    %v1361 = vpack.c.b16 %v985, %v981
    %v1362 = vpack.c.b16 %v986, %v982
    %v1363 = vpack.c.b16 %v987, %v983
    %v1364 = vpack.c.b16 %v992, %v988
    %v1365 = vpack.c.b16 %v993, %v989
    %v1366 = vpack.c.b16 %v994, %v990
    %v1367 = vpack.c.b16 %v995, %v991
    %v1368 = vpack.c.b16 %v1000, %v996
    %v1369 = vpack.c.b16 %v1001, %v997
    %v1370 = vpack.c.b16 %v1002, %v998
    %v1371 = vpack.c.b16 %v1003, %v999
    %v1372 = vpack.c.b16 %v1008, %v1004
    %v1373 = vpack.c.b16 %v1009, %v1005
    %v1374 = vpack.c.b16 %v1010, %v1006
    %v1375 = vpack.c.b16 %v1011, %v1007
    %v1376 = vpack.c.b16 %v1016, %v1012
    %v1377 = vpack.c.b16 %v1017, %v1013
    %v1378 = vpack.c.b16 %v1018, %v1014
    %v1379 = vpack.c.b16 %v1019, %v1015
    %v1380 = vpack.c.b16 %v1024, %v1020
    %v1381 = vpack.c.b16 %v1025, %v1021
    %v1382 = vpack.c.b16 %v1026, %v1022
    %v1383 = vpack.c.b16 %v1027, %v1023
    %v1384 = vpack.c.b16 %v1032, %v1028
    %v1385 = vpack.c.b16 %v1033, %v1029
    %v1386 = vpack.c.b16 %v1034, %v1030
    %v1387 = vpack.c.b16 %v1035, %v1031
    %v1388 = vpack.c.b16 %v1040, %v1036
    %v1389 = vpack.c.b16 %v1041, %v1037
    %v1390 = vpack.c.b16 %v1042, %v1038
    %v1391 = vpack.c.b16 %v1043, %v1039
    %v1392 = vpack.c.b16 %v1048, %v1044
    %v1393 = vpack.c.b16 %v1049, %v1045
    %v1394 = vpack.c.b16 %v1050, %v1046
    %v1395 = vpack.c.b16 %v1051, %v1047
    %v1396 = vpack.c.b16 %v1056, %v1052
    %v1397 = vpack.c.b16 %v1057, %v1053
    %v1398 = vpack.c.b16 %v1058, %v1054
    %v1399 = vpack.c.b16 %v1059, %v1055
    %v1400 = vpack.c.b16 %v1064, %v1060
    %v1401 = vpack.c.b16 %v1065, %v1061
    %v1402 = vpack.c.b16 %v1066, %v1062
    %v1403 = vpack.c.b16 %v1067, %v1063
    %v1404 = vpack.c.b16 %v1072, %v1068
    %v1405 = vpack.c.b16 %v1073, %v1069
    %v1406 = vpack.c.b16 %v1074, %v1070
    %v1407 = vpack.c.b16 %v1075, %v1071
    %v1408 = vpack.c.b16 %v1080, %v1076
    %v1409 = vpack.c.b16 %v1081, %v1077
    %v1410 = vpack.c.b16 %v1082, %v1078
    %v1411 = vpack.c.b16 %v1083, %v1079
    %v1412 = vpack.c.b16 %v1088, %v1084
    %v1413 = vpack.c.b16 %v1089, %v1085
    %v1414 = vpack.c.b16 %v1090, %v1086
    %v1415 = vpack.c.b16 %v1091, %v1087
    %v1416 = vpack.c.b16 %v1096, %v1092
    %v1417 = vpack.c.b16 %v1097, %v1093
    %v1418 = vpack.c.b16 %v1098, %v1094
    %v1419 = vpack.c.b16 %v1099, %v1095
    %v1420 = vpack.c.b16 %v1104, %v1100
    %v1421 = vpack.c.b16 %v1105, %v1101
    %v1422 = vpack.c.b16 %v1106, %v1102
    %v1423 = vpack.c.b16 %v1107, %v1103
    %v1424 = vpack.c.b16 %v1112, %v1108
    %v1425 = vpack.c.b16 %v1113, %v1109
    %v1426 = vpack.c.b16 %v1114, %v1110
    %v1427 = vpack.c.b16 %v1115, %v1111
    %v1428 = vpack.c.b16 %v1120, %v1116
    %v1429 = vpack.c.b16 %v1121, %v1117
    %v1430 = vpack.c.b16 %v1122, %v1118
    %v1431 = vpack.c.b16 %v1123, %v1119
    %v1432 = vpack.c.b16 %v1128, %v1124
    %v1433 = vpack.c.b16 %v1129, %v1125
    %v1434 = vpack.c.b16 %v1130, %v1126
    %v1435 = vpack.c.b16 %v1131, %v1127
    %v1436 = vpack.c.b16 %v1136, %v1132
    %v1437 = vpack.c.b16 %v1137, %v1133
    %v1438 = vpack.c.b16 %v1138, %v1134
    %v1439 = vpack.c.b16 %v1139, %v1135
    %v1440 = vpack.c.b16 %v1144, %v1140
    %v1441 = vpack.c.b16 %v1145, %v1141
    %v1442 = vpack.c.b16 %v1146, %v1142
    %v1443 = vpack.c.b16 %v1147, %v1143
    %v1444 = vpack.c.b16 %v1152, %v1148
    %v1445 = vpack.c.b16 %v1153, %v1149
    %v1446 = vpack.c.b16 %v1154, %v1150
    %v1447 = vpack.c.b16 %v1155, %v1151
    %v1448 = vpack.c.b16 %v1160, %v1156
    %v1449 = vpack.c.b16 %v1161, %v1157
    %v1450 = vpack.c.b16 %v1162, %v1158
    %v1451 = vpack.c.b16 %v1163, %v1159
    %v1452 = vpack.c.b16 %v1168, %v1164
    %v1453 = vpack.c.b16 %v1169, %v1165
    %v1454 = vpack.c.b16 %v1170, %v1166
    %v1455 = vpack.c.b16 %v1171, %v1167
    %v1456 = vpack.c.b16 %v1176, %v1172
    %v1457 = vpack.c.b16 %v1177, %v1173
    %v1458 = vpack.c.b16 %v1178, %v1174
    %v1459 = vpack.c.b16 %v1179, %v1175
    %v1460 = vpack.c.b16 %v1184, %v1180
    %v1461 = vpack.c.b16 %v1185, %v1181
    %v1462 = vpack.c.b16 %v1186, %v1182
    %v1463 = vpack.c.b16 %v1187, %v1183
    %v1464 = vpack.c.b16 %v1192, %v1188
    %v1465 = vpack.c.b16 %v1193, %v1189
    %v1466 = vpack.c.b16 %v1194, %v1190
    %v1467 = vpack.c.b16 %v1195, %v1191
    %v1468 = vpack.c.b16 %v1200, %v1196
    %v1469 = vpack.c.b16 %v1201, %v1197
    %v1470 = vpack.c.b16 %v1202, %v1198
    %v1471 = vpack.c.b16 %v1203, %v1199
    %v1472 = vpack.c.b16 %v1208, %v1204
    %v1473 = vpack.c.b16 %v1209, %v1205
    %v1474 = vpack.c.b16 %v1210, %v1206
    %v1475 = vpack.c.b16 %v1211, %v1207
    %v1476 = vpack.c.b16 %v1216, %v1212
    %v1477 = vpack.c.b16 %v1217, %v1213
    %v1478 = vpack.c.b16 %v1218, %v1214
    %v1479 = vpack.c.b16 %v1219, %v1215
    %v1480 = vpack.c.b16 %v1224, %v1220
    %v1481 = vpack.c.b16 %v1225, %v1221
    %v1482 = vpack.c.b16 %v1226, %v1222
    %v1483 = vpack.c.b16 %v1227, %v1223
    %1740 = vmatprep.subr.bf16.mxu0 %v1229
    %1741 = vmatpush1.bf16.msra.mxu0 %v1228
    %1742 = vmatprep.subr.bf16.mxu0 %v1233
    %1743 = vmatpush1.bf16.msra.mxu0 %v1232
    %1744 = vmatprep.subr.bf16.mxu0 %v1237
    %1745 = vmatpush1.bf16.msra.mxu0 %v1236
    %1746 = vmatprep.subr.bf16.mxu0 %v1241
    %1747 = vmatpush1.bf16.msra.mxu0 %v1240
    %1748 = vmatprep.subr.bf16.mxu0 %v1245
    %1749 = vmatpush1.bf16.msra.mxu0 %v1244
    %1750 = vmatprep.subr.bf16.mxu0 %v1249
    %1751 = vmatpush1.bf16.msra.mxu0 %v1248
    %1752 = vmatprep.subr.bf16.mxu0 %v1253
    %1753 = vmatpush1.bf16.msra.mxu0 %v1252
    %1754 = vmatprep.subr.bf16.mxu0 %v1257
    %1755 = vmatpush1.bf16.msra.mxu0 %v1256
    %1756 = vmatprep.subr.bf16.mxu0 %v1261
    %1757 = vmatpush1.bf16.msra.mxu0 %v1260
    %1758 = vmatprep.subr.bf16.mxu0 %v1265
    %1759 = vmatpush1.bf16.msra.mxu0 %v1264
    %1760 = vmatprep.subr.bf16.mxu0 %v1269
    %1761 = vmatpush1.bf16.msra.mxu0 %v1268
    %1762 = vmatprep.subr.bf16.mxu0 %v1273
    %1763 = vmatpush1.bf16.msra.mxu0 %v1272
    %1764 = vmatprep.subr.bf16.mxu0 %v1277
    %1765 = vmatpush1.bf16.msra.mxu0 %v1276
    %1766 = vmatprep.subr.bf16.mxu0 %v1281
    %1767 = vmatpush1.bf16.msra.mxu0 %v1280
    %1768 = vmatprep.subr.bf16.mxu0 %v1285
    %1769 = vmatpush1.bf16.msra.mxu0 %v1284
    %1770 = vmatprep.subr.bf16.mxu0 %v1289
    %1771 = vmatpush1.bf16.msra.mxu0 %v1288
    %1772 = vmatprep.mubr.bf16.mxu0 %v175
    %1773 = vmatmul.mubr.bf16.gmra.mrb[0].mxu0 %v174
    %v1774 = vpop.f32.mrb[0].mxu0
    %v1775 = vadd.f32 %v443, %v1774
    %v1776 = vpop.f32.mrb[0].mxu0
    %v1777 = vadd.f32 %v447, %v1776
    %v1778 = vpop.f32.mrb[0].mxu0
    %v1779 = vpop.f32.mrb[0].mxu0
    %1780 = vdwg.mxu0
    %1781 = vmatprep.subr.bf16.mxu0 %v1293
    %1782 = vmatpush1.bf16.msra.mxu0 %v1292
    %1783 = vmatprep.subr.bf16.mxu0 %v1297
    %1784 = vmatpush1.bf16.msra.mxu0 %v1296
    %1785 = vmatprep.subr.bf16.mxu0 %v1301
    %1786 = vmatpush1.bf16.msra.mxu0 %v1300
    %1787 = vmatprep.subr.bf16.mxu0 %v1305
    %1788 = vmatpush1.bf16.msra.mxu0 %v1304
    %1789 = vmatprep.subr.bf16.mxu0 %v1309
    %1790 = vmatpush1.bf16.msra.mxu0 %v1308
    %1791 = vmatprep.subr.bf16.mxu0 %v1313
    %1792 = vmatpush1.bf16.msra.mxu0 %v1312
    %1793 = vmatprep.subr.bf16.mxu0 %v1317
    %1794 = vmatpush1.bf16.msra.mxu0 %v1316
    %1795 = vmatprep.subr.bf16.mxu0 %v1321
    %1796 = vmatpush1.bf16.msra.mxu0 %v1320
    %1797 = vmatprep.subr.bf16.mxu0 %v1325
    %1798 = vmatpush1.bf16.msra.mxu0 %v1324
    %1799 = vmatprep.subr.bf16.mxu0 %v1329
    %1800 = vmatpush1.bf16.msra.mxu0 %v1328
    %1801 = vmatprep.subr.bf16.mxu0 %v1333
    %1802 = vmatpush1.bf16.msra.mxu0 %v1332
    %1803 = vmatprep.subr.bf16.mxu0 %v1337
    %1804 = vmatpush1.bf16.msra.mxu0 %v1336
    %1805 = vmatprep.subr.bf16.mxu0 %v1341
    %1806 = vmatpush1.bf16.msra.mxu0 %v1340
    %1807 = vmatprep.subr.bf16.mxu0 %v1345
    %1808 = vmatpush1.bf16.msra.mxu0 %v1344
    %1809 = vmatprep.subr.bf16.mxu0 %v1349
    %1810 = vmatpush1.bf16.msra.mxu0 %v1348
    %1811 = vmatprep.subr.bf16.mxu0 %v1353
    %1812 = vmatpush1.bf16.msra.mxu0 %v1352
    %1813 = vmatprep.mubr.bf16.mxu0 %v177
    %1814 = vmatmul.mubr.bf16.gmra.mrb[0].mxu0 %v176
    %v1815 = vpop.f32.mrb[0].mxu0
    %v1816 = vadd.f32 %v1775, %v1815
    %v1817 = vpop.f32.mrb[0].mxu0
    %v1818 = vadd.f32 %v1777, %v1817
    %v1819 = vpop.f32.mrb[0].mxu0
    %v1820 = vpop.f32.mrb[0].mxu0
    %1821 = vdwg.mxu0
    %1822 = vmatprep.subr.bf16.mxu0 %v1357
    %1823 = vmatpush1.bf16.msra.mxu0 %v1356
    %1824 = vmatprep.subr.bf16.mxu0 %v1361
    %1825 = vmatpush1.bf16.msra.mxu0 %v1360
    %1826 = vmatprep.subr.bf16.mxu0 %v1365
    %1827 = vmatpush1.bf16.msra.mxu0 %v1364
    %1828 = vmatprep.subr.bf16.mxu0 %v1369
    %1829 = vmatpush1.bf16.msra.mxu0 %v1368
    %1830 = vmatprep.subr.bf16.mxu0 %v1373
    %1831 = vmatpush1.bf16.msra.mxu0 %v1372
    %1832 = vmatprep.subr.bf16.mxu0 %v1377
    %1833 = vmatpush1.bf16.msra.mxu0 %v1376
    %1834 = vmatprep.subr.bf16.mxu0 %v1381
    %1835 = vmatpush1.bf16.msra.mxu0 %v1380
    %1836 = vmatprep.subr.bf16.mxu0 %v1385
    %1837 = vmatpush1.bf16.msra.mxu0 %v1384
    %1838 = vmatprep.subr.bf16.mxu0 %v1389
    %1839 = vmatpush1.bf16.msra.mxu0 %v1388
    %1840 = vmatprep.subr.bf16.mxu0 %v1393
    %1841 = vmatpush1.bf16.msra.mxu0 %v1392
    %1842 = vmatprep.subr.bf16.mxu0 %v1397
    %1843 = vmatpush1.bf16.msra.mxu0 %v1396
    %1844 = vmatprep.subr.bf16.mxu0 %v1401
    %1845 = vmatpush1.bf16.msra.mxu0 %v1400
    %1846 = vmatprep.subr.bf16.mxu0 %v1405
    %1847 = vmatpush1.bf16.msra.mxu0 %v1404
    %1848 = vmatprep.subr.bf16.mxu0 %v1409
    %1849 = vmatpush1.bf16.msra.mxu0 %v1408
    %1850 = vmatprep.subr.bf16.mxu0 %v1413
    %1851 = vmatpush1.bf16.msra.mxu0 %v1412
    %1852 = vmatprep.subr.bf16.mxu0 %v1417
    %1853 = vmatpush1.bf16.msra.mxu0 %v1416
    %1854 = vmatprep.mubr.bf16.mxu0 %v179
    %1855 = vmatmul.mubr.bf16.gmra.mrb[0].mxu0 %v178
    %v1856 = vpop.f32.mrb[0].mxu0
    %v1857 = vadd.f32 %v1816, %v1856
    %v1858 = vpop.f32.mrb[0].mxu0
    %v1859 = vadd.f32 %v1818, %v1858
    %v1860 = vpop.f32.mrb[0].mxu0
    %v1861 = vpop.f32.mrb[0].mxu0
    %1862 = vdwg.mxu0
    %1863 = vmatprep.subr.bf16.mxu0 %v1421
    %1864 = vmatpush1.bf16.msra.mxu0 %v1420
    %1865 = vmatprep.subr.bf16.mxu0 %v1425
    %1866 = vmatpush1.bf16.msra.mxu0 %v1424
    %1867 = vmatprep.subr.bf16.mxu0 %v1429
    %1868 = vmatpush1.bf16.msra.mxu0 %v1428
    %1869 = vmatprep.subr.bf16.mxu0 %v1433
    %1870 = vmatpush1.bf16.msra.mxu0 %v1432
    %1871 = vmatprep.subr.bf16.mxu0 %v1437
    %1872 = vmatpush1.bf16.msra.mxu0 %v1436
    %1873 = vmatprep.subr.bf16.mxu0 %v1441
    %1874 = vmatpush1.bf16.msra.mxu0 %v1440
    %1875 = vmatprep.subr.bf16.mxu0 %v1445
    %1876 = vmatpush1.bf16.msra.mxu0 %v1444
    %1877 = vmatprep.subr.bf16.mxu0 %v1449
    %1878 = vmatpush1.bf16.msra.mxu0 %v1448
    %1879 = vmatprep.subr.bf16.mxu0 %v1453
    %1880 = vmatpush1.bf16.msra.mxu0 %v1452
    %1881 = vmatprep.subr.bf16.mxu0 %v1457
    %1882 = vmatpush1.bf16.msra.mxu0 %v1456
    %1883 = vmatprep.subr.bf16.mxu0 %v1461
    %1884 = vmatpush1.bf16.msra.mxu0 %v1460
    %1885 = vmatprep.subr.bf16.mxu0 %v1465
    %1886 = vmatpush1.bf16.msra.mxu0 %v1464
    %1887 = vmatprep.subr.bf16.mxu0 %v1469
    %1888 = vmatpush1.bf16.msra.mxu0 %v1468
    %1889 = vmatprep.subr.bf16.mxu0 %v1473
    %1890 = vmatpush1.bf16.msra.mxu0 %v1472
    %1891 = vmatprep.subr.bf16.mxu0 %v1477
    %1892 = vmatpush1.bf16.msra.mxu0 %v1476
    %1893 = vmatprep.subr.bf16.mxu0 %v1481
    %1894 = vmatpush1.bf16.msra.mxu0 %v1480
    %1895 = vmatprep.mubr.bf16.mxu0 %v181
    %1896 = vmatmul.mubr.bf16.gmra.mrb[0].mxu0 %v180
    %v1897 = vpop.f32.mrb[0].mxu0
    %v1898 = vadd.f32 %v1857, %v1897
    %v1899 = vpop.f32.mrb[0].mxu0
    %v1900 = vadd.f32 %v1859, %v1899
    %v1901 = vpop.f32.mrb[0].mxu0
    %v1902 = vpop.f32.mrb[0].mxu0
    %1903 = vdwg.mxu0
    %1904 = vmatprep.subr.bf16.mxu0 %v1231
    %1905 = vmatpush1.bf16.msra.mxu0 %v1230
    %1906 = vmatprep.subr.bf16.mxu0 %v1235
    %1907 = vmatpush1.bf16.msra.mxu0 %v1234
    %1908 = vmatprep.subr.bf16.mxu0 %v1239
    %1909 = vmatpush1.bf16.msra.mxu0 %v1238
    %1910 = vmatprep.subr.bf16.mxu0 %v1243
    %1911 = vmatpush1.bf16.msra.mxu0 %v1242
    %1912 = vmatprep.subr.bf16.mxu0 %v1247
    %1913 = vmatpush1.bf16.msra.mxu0 %v1246
    %1914 = vmatprep.subr.bf16.mxu0 %v1251
    %1915 = vmatpush1.bf16.msra.mxu0 %v1250
    %1916 = vmatprep.subr.bf16.mxu0 %v1255
    %1917 = vmatpush1.bf16.msra.mxu0 %v1254
    %1918 = vmatprep.subr.bf16.mxu0 %v1259
    %1919 = vmatpush1.bf16.msra.mxu0 %v1258
    %1920 = vmatprep.subr.bf16.mxu0 %v1263
    %1921 = vmatpush1.bf16.msra.mxu0 %v1262
    %1922 = vmatprep.subr.bf16.mxu0 %v1267
    %1923 = vmatpush1.bf16.msra.mxu0 %v1266
    %1924 = vmatprep.subr.bf16.mxu0 %v1271
    %1925 = vmatpush1.bf16.msra.mxu0 %v1270
    %1926 = vmatprep.subr.bf16.mxu0 %v1275
    %1927 = vmatpush1.bf16.msra.mxu0 %v1274
    %1928 = vmatprep.subr.bf16.mxu0 %v1279
    %1929 = vmatpush1.bf16.msra.mxu0 %v1278
    %1930 = vmatprep.subr.bf16.mxu0 %v1283
    %1931 = vmatpush1.bf16.msra.mxu0 %v1282
    %1932 = vmatprep.subr.bf16.mxu0 %v1287
    %1933 = vmatpush1.bf16.msra.mxu0 %v1286
    %1934 = vmatprep.subr.bf16.mxu0 %v1291
    %1935 = vmatpush1.bf16.msra.mxu0 %v1290
    %1936 = vmatprep.mubr.bf16.mxu0 %v175
    %1937 = vmatmul.mubr.bf16.gmra.mrb[0].mxu0 %v174
    %v1938 = vpop.f32.mrb[0].mxu0
    %v1939 = vadd.f32 %v451, %v1938
    %v1940 = vpop.f32.mrb[0].mxu0
    %v1941 = vadd.f32 %v455, %v1940
    %v1942 = vpop.f32.mrb[0].mxu0
    %v1943 = vpop.f32.mrb[0].mxu0
    %1944 = vdwg.mxu0
    %1945 = vmatprep.subr.bf16.mxu0 %v1295
    %1946 = vmatpush1.bf16.msra.mxu0 %v1294
    %1947 = vmatprep.subr.bf16.mxu0 %v1299
    %1948 = vmatpush1.bf16.msra.mxu0 %v1298
    %1949 = vmatprep.subr.bf16.mxu0 %v1303
    %1950 = vmatpush1.bf16.msra.mxu0 %v1302
    %1951 = vmatprep.subr.bf16.mxu0 %v1307
    %1952 = vmatpush1.bf16.msra.mxu0 %v1306
    %1953 = vmatprep.subr.bf16.mxu0 %v1311
    %1954 = vmatpush1.bf16.msra.mxu0 %v1310
    %1955 = vmatprep.subr.bf16.mxu0 %v1315
    %1956 = vmatpush1.bf16.msra.mxu0 %v1314
    %1957 = vmatprep.subr.bf16.mxu0 %v1319
    %1958 = vmatpush1.bf16.msra.mxu0 %v1318
    %1959 = vmatprep.subr.bf16.mxu0 %v1323
    %1960 = vmatpush1.bf16.msra.mxu0 %v1322
    %1961 = vmatprep.subr.bf16.mxu0 %v1327
    %1962 = vmatpush1.bf16.msra.mxu0 %v1326
    %1963 = vmatprep.subr.bf16.mxu0 %v1331
    %1964 = vmatpush1.bf16.msra.mxu0 %v1330
    %1965 = vmatprep.subr.bf16.mxu0 %v1335
    %1966 = vmatpush1.bf16.msra.mxu0 %v1334
    %1967 = vmatprep.subr.bf16.mxu0 %v1339
    %1968 = vmatpush1.bf16.msra.mxu0 %v1338
    %1969 = vmatprep.subr.bf16.mxu0 %v1343
    %1970 = vmatpush1.bf16.msra.mxu0 %v1342
    %1971 = vmatprep.subr.bf16.mxu0 %v1347
    %1972 = vmatpush1.bf16.msra.mxu0 %v1346
    %1973 = vmatprep.subr.bf16.mxu0 %v1351
    %1974 = vmatpush1.bf16.msra.mxu0 %v1350
    %1975 = vmatprep.subr.bf16.mxu0 %v1355
    %1976 = vmatpush1.bf16.msra.mxu0 %v1354
    %1977 = vmatprep.mubr.bf16.mxu0 %v177
    %1978 = vmatmul.mubr.bf16.gmra.mrb[0].mxu0 %v176
    %v1979 = vpop.f32.mrb[0].mxu0
    %v1980 = vadd.f32 %v1939, %v1979
    %v1981 = vpop.f32.mrb[0].mxu0
    %v1982 = vadd.f32 %v1941, %v1981
    %v1983 = vpop.f32.mrb[0].mxu0
    %v1984 = vpop.f32.mrb[0].mxu0
    %1985 = vdwg.mxu0
    %1986 = vmatprep.subr.bf16.mxu0 %v1359
    %1987 = vmatpush1.bf16.msra.mxu0 %v1358
    %1988 = vmatprep.subr.bf16.mxu0 %v1363
    %1989 = vmatpush1.bf16.msra.mxu0 %v1362
    %1990 = vmatprep.subr.bf16.mxu0 %v1367
    %1991 = vmatpush1.bf16.msra.mxu0 %v1366
    %1992 = vmatprep.subr.bf16.mxu0 %v1371
    %1993 = vmatpush1.bf16.msra.mxu0 %v1370
    %1994 = vmatprep.subr.bf16.mxu0 %v1375
    %1995 = vmatpush1.bf16.msra.mxu0 %v1374
    %1996 = vmatprep.subr.bf16.mxu0 %v1379
    %1997 = vmatpush1.bf16.msra.mxu0 %v1378
    %1998 = vmatprep.subr.bf16.mxu0 %v1383
    %1999 = vmatpush1.bf16.msra.mxu0 %v1382
    %2000 = vmatprep.subr.bf16.mxu0 %v1387
    %2001 = vmatpush1.bf16.msra.mxu0 %v1386
    %2002 = vmatprep.subr.bf16.mxu0 %v1391
    %2003 = vmatpush1.bf16.msra.mxu0 %v1390
    %2004 = vmatprep.subr.bf16.mxu0 %v1395
    %2005 = vmatpush1.bf16.msra.mxu0 %v1394
    %2006 = vmatprep.subr.bf16.mxu0 %v1399
    %2007 = vmatpush1.bf16.msra.mxu0 %v1398
    %2008 = vmatprep.subr.bf16.mxu0 %v1403
    %2009 = vmatpush1.bf16.msra.mxu0 %v1402
    %2010 = vmatprep.subr.bf16.mxu0 %v1407
    %2011 = vmatpush1.bf16.msra.mxu0 %v1406
    %2012 = vmatprep.subr.bf16.mxu0 %v1411
    %2013 = vmatpush1.bf16.msra.mxu0 %v1410
    %2014 = vmatprep.subr.bf16.mxu0 %v1415
    %2015 = vmatpush1.bf16.msra.mxu0 %v1414
    %2016 = vmatprep.subr.bf16.mxu0 %v1419
    %2017 = vmatpush1.bf16.msra.mxu0 %v1418
    %2018 = vmatprep.mubr.bf16.mxu0 %v179
    %2019 = vmatmul.mubr.bf16.gmra.mrb[0].mxu0 %v178
    %v2020 = vpop.f32.mrb[0].mxu0
    %v2021 = vadd.f32 %v1980, %v2020
    %v2022 = vpop.f32.mrb[0].mxu0
    %v2023 = vadd.f32 %v1982, %v2022
    %v2024 = vpop.f32.mrb[0].mxu0
    %v2025 = vpop.f32.mrb[0].mxu0
    %2026 = vdwg.mxu0
    %2027 = vmatprep.subr.bf16.mxu0 %v1423
    %2028 = vmatpush1.bf16.msra.mxu0 %v1422
    %2029 = vmatprep.subr.bf16.mxu0 %v1427
    %2030 = vmatpush1.bf16.msra.mxu0 %v1426
    %2031 = vmatprep.subr.bf16.mxu0 %v1431
    %2032 = vmatpush1.bf16.msra.mxu0 %v1430
    %2033 = vmatprep.subr.bf16.mxu0 %v1435
    %2034 = vmatpush1.bf16.msra.mxu0 %v1434
    %2035 = vmatprep.subr.bf16.mxu0 %v1439
    %2036 = vmatpush1.bf16.msra.mxu0 %v1438
    %2037 = vmatprep.subr.bf16.mxu0 %v1443
    %2038 = vmatpush1.bf16.msra.mxu0 %v1442
    %2039 = vmatprep.subr.bf16.mxu0 %v1447
    %2040 = vmatpush1.bf16.msra.mxu0 %v1446
    %2041 = vmatprep.subr.bf16.mxu0 %v1451
    %2042 = vmatpush1.bf16.msra.mxu0 %v1450
    %2043 = vmatprep.subr.bf16.mxu0 %v1455
    %2044 = vmatpush1.bf16.msra.mxu0 %v1454
    %2045 = vmatprep.subr.bf16.mxu0 %v1459
    %2046 = vmatpush1.bf16.msra.mxu0 %v1458
    %2047 = vmatprep.subr.bf16.mxu0 %v1463
    %2048 = vmatpush1.bf16.msra.mxu0 %v1462
    %2049 = vmatprep.subr.bf16.mxu0 %v1467
    %2050 = vmatpush1.bf16.msra.mxu0 %v1466
    %2051 = vmatprep.subr.bf16.mxu0 %v1471
    %2052 = vmatpush1.bf16.msra.mxu0 %v1470
    %2053 = vmatprep.subr.bf16.mxu0 %v1475
    %2054 = vmatpush1.bf16.msra.mxu0 %v1474
    %2055 = vmatprep.subr.bf16.mxu0 %v1479
    %2056 = vmatpush1.bf16.msra.mxu0 %v1478
    %2057 = vmatprep.subr.bf16.mxu0 %v1483
    %2058 = vmatpush1.bf16.msra.mxu0 %v1482
    %2059 = vmatprep.mubr.bf16.mxu0 %v181
    %2060 = vmatmul.mubr.bf16.gmra.mrb[0].mxu0 %v180
    %v2061 = vpop.f32.mrb[0].mxu0
    %v2062 = vadd.f32 %v2021, %v2061
    %v2063 = vpop.f32.mrb[0].mxu0
    %v2064 = vadd.f32 %v2023, %v2063
    %v2065 = vpop.f32.mrb[0].mxu0
    %v2066 = vpop.f32.mrb[0].mxu0
    %2067 = vdwg.mxu0
    %v2068 = vmax.f32 %v1898, 0.0
    %v2069 = vmax.f32 %v1900, 0.0
    %v2070 = vmax.f32 %v2062, 0.0
    %v2071 = vmax.f32 %v2064, 0.0
    %v2072 = vpack.c.bf16 %v2068, %v2068
    %v2073 = vpack.c.bf16 %v2069, %v2069
    %v2074 = vpack.c.bf16 %v2070, %v2070
    %v2075 = vpack.c.bf16 %v2071, %v2071
    %v2076 = vld [vmem:[#allocation9] sm:$0xff]
    %v2077 = vld [vmem:[#allocation9 + $0x8] sm:$0xff]
    %v2078 = vld [vmem:[#allocation9 + $0x10] sm:$0xff]
    %v2079 = vld [vmem:[#allocation9 + $0x18] sm:$0xff]
    %v2080 = vld [vmem:[#allocation9 + $0x20] sm:$0xff]
    %v2081 = vld [vmem:[#allocation9 + $0x28] sm:$0xff]
    %v2082 = vld [vmem:[#allocation9 + $0x30] sm:$0xff]
    %v2083 = vld [vmem:[#allocation9 + $0x38] sm:$0xff]
    %v2084 = vld [vmem:[#allocation9 + $0x40] sm:$0xff]
    %v2085 = vld [vmem:[#allocation9 + $0x48] sm:$0xff]
    %v2086 = vld [vmem:[#allocation9 + $0x50] sm:$0xff]
    %v2087 = vld [vmem:[#allocation9 + $0x58] sm:$0xff]
    %v2088 = vld [vmem:[#allocation9 + $0x60] sm:$0xff]
    %v2089 = vld [vmem:[#allocation9 + $0x68] sm:$0xff]
    %v2090 = vld [vmem:[#allocation9 + $0x70] sm:$0xff]
    %v2091 = vld [vmem:[#allocation9 + $0x78] sm:$0xff]
    %v2092 = vld [vmem:[#allocation9 + $0x80] sm:$0xff]
    %v2093 = vld [vmem:[#allocation9 + $0x88] sm:$0xff]
    %v2094 = vld [vmem:[#allocation9 + $0x90] sm:$0xff]
    %v2095 = vld [vmem:[#allocation9 + $0x98] sm:$0xff]
    %v2096 = vld [vmem:[#allocation9 + $0xa0] sm:$0xff]
    %v2097 = vld [vmem:[#allocation9 + $0xa8] sm:$0xff]
    %v2098 = vld [vmem:[#allocation9 + $0xb0] sm:$0xff]
    %v2099 = vld [vmem:[#allocation9 + $0xb8] sm:$0xff]
    %v2100 = vld [vmem:[#allocation9 + $0xc0] sm:$0xff]
    %v2101 = vld [vmem:[#allocation9 + $0xc8] sm:$0xff]
    %v2102 = vld [vmem:[#allocation9 + $0xd0] sm:$0xff]
    %v2103 = vld [vmem:[#allocation9 + $0xd8] sm:$0xff]
    %v2104 = vld [vmem:[#allocation9 + $0xe0] sm:$0xff]
    %v2105 = vld [vmem:[#allocation9 + $0xe8] sm:$0xff]
    %v2106 = vld [vmem:[#allocation9 + $0xf0] sm:$0xff]
    %v2107 = vld [vmem:[#allocation9 + $0xf8] sm:$0xff]
    %v2108 = vld [vmem:[#allocation9 + $0x100] sm:$0xff]
    %v2109 = vld [vmem:[#allocation9 + $0x108] sm:$0xff]
    %v2110 = vld [vmem:[#allocation9 + $0x110] sm:$0xff]
    %v2111 = vld [vmem:[#allocation9 + $0x118] sm:$0xff]
    %v2112 = vld [vmem:[#allocation9 + $0x120] sm:$0xff]
    %v2113 = vld [vmem:[#allocation9 + $0x128] sm:$0xff]
    %v2114 = vld [vmem:[#allocation9 + $0x130] sm:$0xff]
    %v2115 = vld [vmem:[#allocation9 + $0x138] sm:$0xff]
    %v2116 = vld [vmem:[#allocation9 + $0x140] sm:$0xff]
    %v2117 = vld [vmem:[#allocation9 + $0x148] sm:$0xff]
    %v2118 = vld [vmem:[#allocation9 + $0x150] sm:$0xff]
    %v2119 = vld [vmem:[#allocation9 + $0x158] sm:$0xff]
    %v2120 = vld [vmem:[#allocation9 + $0x160] sm:$0xff]
    %v2121 = vld [vmem:[#allocation9 + $0x168] sm:$0xff]
    %v2122 = vld [vmem:[#allocation9 + $0x170] sm:$0xff]
    %v2123 = vld [vmem:[#allocation9 + $0x178] sm:$0xff]
    %v2124 = vld [vmem:[#allocation9 + $0x180] sm:$0xff]
    %v2125 = vld [vmem:[#allocation9 + $0x188] sm:$0xff]
    %v2126 = vld [vmem:[#allocation9 + $0x190] sm:$0xff]
    %v2127 = vld [vmem:[#allocation9 + $0x198] sm:$0xff]
    %v2128 = vld [vmem:[#allocation9 + $0x1a0] sm:$0xff]
    %v2129 = vld [vmem:[#allocation9 + $0x1a8] sm:$0xff]
    %v2130 = vld [vmem:[#allocation9 + $0x1b0] sm:$0xff]
    %v2131 = vld [vmem:[#allocation9 + $0x1b8] sm:$0xff]
    %v2132 = vld [vmem:[#allocation9 + $0x1c0] sm:$0xff]
    %v2133 = vld [vmem:[#allocation9 + $0x1c8] sm:$0xff]
    %v2134 = vld [vmem:[#allocation9 + $0x1d0] sm:$0xff]
    %v2135 = vld [vmem:[#allocation9 + $0x1d8] sm:$0xff]
    %v2136 = vld [vmem:[#allocation9 + $0x1e0] sm:$0xff]
    %v2137 = vld [vmem:[#allocation9 + $0x1e8] sm:$0xff]
    %v2138 = vld [vmem:[#allocation9 + $0x1f0] sm:$0xff]
    %v2139 = vld [vmem:[#allocation9 + $0x1f8] sm:$0xff]
    %v2140 = vld [vmem:[%s6] sm:$0x3]
    %v2142 = vlaneseq
    %v2143 = vshrl.u32 %v2142, 7
    %v2144 = vsub.s32 0, %v2143
    %v2145 = vrot.slane %v2140, %v2144
    %v2146 = vlaneseq
    %v2147 = vshrl.u32 %v2146, 7
    %v2148 = vsub.s32 1, %v2147
    %v2149 = vrot.slane %v2140, %v2148
    %v2216 = vunpack.c.l.b16 %v2076
    %v2217 = vunpack.c.h.b16 %v2076
    %v2218 = vunpack.c.l.b16 %v2077
    %v2219 = vunpack.c.h.b16 %v2077
    %v2220 = vunpack.c.l.b16 %v2078
    %v2221 = vunpack.c.h.b16 %v2078
    %v2222 = vunpack.c.l.b16 %v2079
    %v2223 = vunpack.c.h.b16 %v2079
    %v2224 = vunpack.c.l.b16 %v2080
    %v2225 = vunpack.c.h.b16 %v2080
    %v2226 = vunpack.c.l.b16 %v2081
    %v2227 = vunpack.c.h.b16 %v2081
    %v2228 = vunpack.c.l.b16 %v2082
    %v2229 = vunpack.c.h.b16 %v2082
    %v2230 = vunpack.c.l.b16 %v2083
    %v2231 = vunpack.c.h.b16 %v2083
    %v2232 = vunpack.c.l.b16 %v2084
    %v2233 = vunpack.c.h.b16 %v2084
    %v2234 = vunpack.c.l.b16 %v2085
    %v2235 = vunpack.c.h.b16 %v2085
    %v2236 = vunpack.c.l.b16 %v2086
    %v2237 = vunpack.c.h.b16 %v2086
    %v2238 = vunpack.c.l.b16 %v2087
    %v2239 = vunpack.c.h.b16 %v2087
    %v2240 = vunpack.c.l.b16 %v2088
    %v2241 = vunpack.c.h.b16 %v2088
    %v2242 = vunpack.c.l.b16 %v2089
    %v2243 = vunpack.c.h.b16 %v2089
    %v2244 = vunpack.c.l.b16 %v2090
    %v2245 = vunpack.c.h.b16 %v2090
    %v2246 = vunpack.c.l.b16 %v2091
    %v2247 = vunpack.c.h.b16 %v2091
    %v2248 = vunpack.c.l.b16 %v2092
    %v2249 = vunpack.c.h.b16 %v2092
    %v2250 = vunpack.c.l.b16 %v2093
    %v2251 = vunpack.c.h.b16 %v2093
    %v2252 = vunpack.c.l.b16 %v2094
    %v2253 = vunpack.c.h.b16 %v2094
    %v2254 = vunpack.c.l.b16 %v2095
    %v2255 = vunpack.c.h.b16 %v2095
    %v2256 = vunpack.c.l.b16 %v2096
    %v2257 = vunpack.c.h.b16 %v2096
    %v2258 = vunpack.c.l.b16 %v2097
    %v2259 = vunpack.c.h.b16 %v2097
    %v2260 = vunpack.c.l.b16 %v2098
    %v2261 = vunpack.c.h.b16 %v2098
    %v2262 = vunpack.c.l.b16 %v2099
    %v2263 = vunpack.c.h.b16 %v2099
    %v2264 = vunpack.c.l.b16 %v2100
    %v2265 = vunpack.c.h.b16 %v2100
    %v2266 = vunpack.c.l.b16 %v2101
    %v2267 = vunpack.c.h.b16 %v2101
    %v2268 = vunpack.c.l.b16 %v2102
    %v2269 = vunpack.c.h.b16 %v2102
    %v2270 = vunpack.c.l.b16 %v2103
    %v2271 = vunpack.c.h.b16 %v2103
    %v2272 = vunpack.c.l.b16 %v2104
    %v2273 = vunpack.c.h.b16 %v2104
    %v2274 = vunpack.c.l.b16 %v2105
    %v2275 = vunpack.c.h.b16 %v2105
    %v2276 = vunpack.c.l.b16 %v2106
    %v2277 = vunpack.c.h.b16 %v2106
    %v2278 = vunpack.c.l.b16 %v2107
    %v2279 = vunpack.c.h.b16 %v2107
    %v2280 = vunpack.c.l.b16 %v2108
    %v2281 = vunpack.c.h.b16 %v2108
    %v2282 = vunpack.c.l.b16 %v2109
    %v2283 = vunpack.c.h.b16 %v2109
    %v2284 = vunpack.c.l.b16 %v2110
    %v2285 = vunpack.c.h.b16 %v2110
    %v2286 = vunpack.c.l.b16 %v2111
    %v2287 = vunpack.c.h.b16 %v2111
    %v2288 = vunpack.c.l.b16 %v2112
    %v2289 = vunpack.c.h.b16 %v2112
    %v2290 = vunpack.c.l.b16 %v2113
    %v2291 = vunpack.c.h.b16 %v2113
    %v2292 = vunpack.c.l.b16 %v2114
    %v2293 = vunpack.c.h.b16 %v2114
    %v2294 = vunpack.c.l.b16 %v2115
    %v2295 = vunpack.c.h.b16 %v2115
    %v2296 = vunpack.c.l.b16 %v2116
    %v2297 = vunpack.c.h.b16 %v2116
    %v2298 = vunpack.c.l.b16 %v2117
    %v2299 = vunpack.c.h.b16 %v2117
    %v2300 = vunpack.c.l.b16 %v2118
    %v2301 = vunpack.c.h.b16 %v2118
    %v2302 = vunpack.c.l.b16 %v2119
    %v2303 = vunpack.c.h.b16 %v2119
    %v2304 = vunpack.c.l.b16 %v2120
    %v2305 = vunpack.c.h.b16 %v2120
    %v2306 = vunpack.c.l.b16 %v2121
    %v2307 = vunpack.c.h.b16 %v2121
    %v2308 = vunpack.c.l.b16 %v2122
    %v2309 = vunpack.c.h.b16 %v2122
    %v2310 = vunpack.c.l.b16 %v2123
    %v2311 = vunpack.c.h.b16 %v2123
    %v2312 = vunpack.c.l.b16 %v2124
    %v2313 = vunpack.c.h.b16 %v2124
    %v2314 = vunpack.c.l.b16 %v2125
    %v2315 = vunpack.c.h.b16 %v2125
    %v2316 = vunpack.c.l.b16 %v2126
    %v2317 = vunpack.c.h.b16 %v2126
    %v2318 = vunpack.c.l.b16 %v2127
    %v2319 = vunpack.c.h.b16 %v2127
    %v2320 = vunpack.c.l.b16 %v2128
    %v2321 = vunpack.c.h.b16 %v2128
    %v2322 = vunpack.c.l.b16 %v2129
    %v2323 = vunpack.c.h.b16 %v2129
    %v2324 = vunpack.c.l.b16 %v2130
    %v2325 = vunpack.c.h.b16 %v2130
    %v2326 = vunpack.c.l.b16 %v2131
    %v2327 = vunpack.c.h.b16 %v2131
    %v2328 = vunpack.c.l.b16 %v2132
    %v2329 = vunpack.c.h.b16 %v2132
    %v2330 = vunpack.c.l.b16 %v2133
    %v2331 = vunpack.c.h.b16 %v2133
    %v2332 = vunpack.c.l.b16 %v2134
    %v2333 = vunpack.c.h.b16 %v2134
    %v2334 = vunpack.c.l.b16 %v2135
    %v2335 = vunpack.c.h.b16 %v2135
    %v2336 = vunpack.c.l.b16 %v2136
    %v2337 = vunpack.c.h.b16 %v2136
    %v2338 = vunpack.c.l.b16 %v2137
    %v2339 = vunpack.c.h.b16 %v2137
    %v2340 = vunpack.c.l.b16 %v2138
    %v2341 = vunpack.c.h.b16 %v2138
    %v2342 = vunpack.c.l.b16 %v2139
    %v2343 = vunpack.c.h.b16 %v2139
    %v2344 = vpack.c.b16 %v2218, %v2216
    %v2345 = vpack.c.b16 %v2219, %v2217
    %v2346 = vpack.c.b16 %v2222, %v2220
    %v2347 = vpack.c.b16 %v2223, %v2221
    %v2348 = vpack.c.b16 %v2226, %v2224
    %v2349 = vpack.c.b16 %v2227, %v2225
    %v2350 = vpack.c.b16 %v2230, %v2228
    %v2351 = vpack.c.b16 %v2231, %v2229
    %v2352 = vpack.c.b16 %v2234, %v2232
    %v2353 = vpack.c.b16 %v2235, %v2233
    %v2354 = vpack.c.b16 %v2238, %v2236
    %v2355 = vpack.c.b16 %v2239, %v2237
    %v2356 = vpack.c.b16 %v2242, %v2240
    %v2357 = vpack.c.b16 %v2243, %v2241
    %v2358 = vpack.c.b16 %v2246, %v2244
    %v2359 = vpack.c.b16 %v2247, %v2245
    %v2360 = vpack.c.b16 %v2250, %v2248
    %v2361 = vpack.c.b16 %v2251, %v2249
    %v2362 = vpack.c.b16 %v2254, %v2252
    %v2363 = vpack.c.b16 %v2255, %v2253
    %v2364 = vpack.c.b16 %v2258, %v2256
    %v2365 = vpack.c.b16 %v2259, %v2257
    %v2366 = vpack.c.b16 %v2262, %v2260
    %v2367 = vpack.c.b16 %v2263, %v2261
    %v2368 = vpack.c.b16 %v2266, %v2264
    %v2369 = vpack.c.b16 %v2267, %v2265
    %v2370 = vpack.c.b16 %v2270, %v2268
    %v2371 = vpack.c.b16 %v2271, %v2269
    %v2372 = vpack.c.b16 %v2274, %v2272
    %v2373 = vpack.c.b16 %v2275, %v2273
    %v2374 = vpack.c.b16 %v2278, %v2276
    %v2375 = vpack.c.b16 %v2279, %v2277
    %v2376 = vpack.c.b16 %v2282, %v2280
    %v2377 = vpack.c.b16 %v2283, %v2281
    %v2378 = vpack.c.b16 %v2286, %v2284
    %v2379 = vpack.c.b16 %v2287, %v2285
    %v2380 = vpack.c.b16 %v2290, %v2288
    %v2381 = vpack.c.b16 %v2291, %v2289
    %v2382 = vpack.c.b16 %v2294, %v2292
    %v2383 = vpack.c.b16 %v2295, %v2293
    %v2384 = vpack.c.b16 %v2298, %v2296
    %v2385 = vpack.c.b16 %v2299, %v2297
    %v2386 = vpack.c.b16 %v2302, %v2300
    %v2387 = vpack.c.b16 %v2303, %v2301
    %v2388 = vpack.c.b16 %v2306, %v2304
    %v2389 = vpack.c.b16 %v2307, %v2305
    %v2390 = vpack.c.b16 %v2310, %v2308
    %v2391 = vpack.c.b16 %v2311, %v2309
    %v2392 = vpack.c.b16 %v2314, %v2312
    %v2393 = vpack.c.b16 %v2315, %v2313
    %v2394 = vpack.c.b16 %v2318, %v2316
    %v2395 = vpack.c.b16 %v2319, %v2317
    %v2396 = vpack.c.b16 %v2322, %v2320
    %v2397 = vpack.c.b16 %v2323, %v2321
    %v2398 = vpack.c.b16 %v2326, %v2324
    %v2399 = vpack.c.b16 %v2327, %v2325
    %v2400 = vpack.c.b16 %v2330, %v2328
    %v2401 = vpack.c.b16 %v2331, %v2329
    %v2402 = vpack.c.b16 %v2334, %v2332
    %v2403 = vpack.c.b16 %v2335, %v2333
    %v2404 = vpack.c.b16 %v2338, %v2336
    %v2405 = vpack.c.b16 %v2339, %v2337
    %v2406 = vpack.c.b16 %v2342, %v2340
    %v2407 = vpack.c.b16 %v2343, %v2341
    %2472 = vmatprep.subr.bf16.mxu0 %v2345
    %2473 = vmatpush1.bf16.msra.mxu0 %v2344
    %2474 = vmatprep.subr.bf16.mxu0 %v2347
    %2475 = vmatpush1.bf16.msra.mxu0 %v2346
    %2476 = vmatprep.subr.bf16.mxu0 %v2349
    %2477 = vmatpush1.bf16.msra.mxu0 %v2348
    %2478 = vmatprep.subr.bf16.mxu0 %v2351
    %2479 = vmatpush1.bf16.msra.mxu0 %v2350
    %2480 = vmatprep.subr.bf16.mxu0 %v2353
    %2481 = vmatpush1.bf16.msra.mxu0 %v2352
    %2482 = vmatprep.subr.bf16.mxu0 %v2355
    %2483 = vmatpush1.bf16.msra.mxu0 %v2354
    %2484 = vmatprep.subr.bf16.mxu0 %v2357
    %2485 = vmatpush1.bf16.msra.mxu0 %v2356
    %2486 = vmatprep.subr.bf16.mxu0 %v2359
    %2487 = vmatpush1.bf16.msra.mxu0 %v2358
    %2488 = vmatprep.subr.bf16.mxu0 %v2361
    %2489 = vmatpush1.bf16.msra.mxu0 %v2360
    %2490 = vmatprep.subr.bf16.mxu0 %v2363
    %2491 = vmatpush1.bf16.msra.mxu0 %v2362
    %2492 = vmatprep.subr.bf16.mxu0 %v2365
    %2493 = vmatpush1.bf16.msra.mxu0 %v2364
    %2494 = vmatprep.subr.bf16.mxu0 %v2367
    %2495 = vmatpush1.bf16.msra.mxu0 %v2366
    %2496 = vmatprep.subr.bf16.mxu0 %v2369
    %2497 = vmatpush1.bf16.msra.mxu0 %v2368
    %2498 = vmatprep.subr.bf16.mxu0 %v2371
    %2499 = vmatpush1.bf16.msra.mxu0 %v2370
    %2500 = vmatprep.subr.bf16.mxu0 %v2373
    %2501 = vmatpush1.bf16.msra.mxu0 %v2372
    %2502 = vmatprep.subr.bf16.mxu0 %v2375
    %2503 = vmatpush1.bf16.msra.mxu0 %v2374
    %2504 = vmatprep.mubr.bf16.mxu0 %v2073
    %2505 = vmatmul.mubr.bf16.gmra.mrb[0].mxu0 %v2072
    %v2506 = vpop.f32.mrb[0].mxu0
    %v2507 = vadd.f32 %v2145, %v2506
    %v2508 = vpop.f32.mrb[0].mxu0
    %v2509 = vadd.f32 %v2149, %v2508
    %v2510 = vpop.f32.mrb[0].mxu0
    %v2511 = vpop.f32.mrb[0].mxu0
    %2512 = vdwg.mxu0
    %2513 = vmatprep.subr.bf16.mxu0 %v2377
    %2514 = vmatpush1.bf16.msra.mxu0 %v2376
    %2515 = vmatprep.subr.bf16.mxu0 %v2379
    %2516 = vmatpush1.bf16.msra.mxu0 %v2378
    %2517 = vmatprep.subr.bf16.mxu0 %v2381
    %2518 = vmatpush1.bf16.msra.mxu0 %v2380
    %2519 = vmatprep.subr.bf16.mxu0 %v2383
    %2520 = vmatpush1.bf16.msra.mxu0 %v2382
    %2521 = vmatprep.subr.bf16.mxu0 %v2385
    %2522 = vmatpush1.bf16.msra.mxu0 %v2384
    %2523 = vmatprep.subr.bf16.mxu0 %v2387
    %2524 = vmatpush1.bf16.msra.mxu0 %v2386
    %2525 = vmatprep.subr.bf16.mxu0 %v2389
    %2526 = vmatpush1.bf16.msra.mxu0 %v2388
    %2527 = vmatprep.subr.bf16.mxu0 %v2391
    %2528 = vmatpush1.bf16.msra.mxu0 %v2390
    %2529 = vmatprep.subr.bf16.mxu0 %v2393
    %2530 = vmatpush1.bf16.msra.mxu0 %v2392
    %2531 = vmatprep.subr.bf16.mxu0 %v2395
    %2532 = vmatpush1.bf16.msra.mxu0 %v2394
    %2533 = vmatprep.subr.bf16.mxu0 %v2397
    %2534 = vmatpush1.bf16.msra.mxu0 %v2396
    %2535 = vmatprep.subr.bf16.mxu0 %v2399
    %2536 = vmatpush1.bf16.msra.mxu0 %v2398
    %2537 = vmatprep.subr.bf16.mxu0 %v2401
    %2538 = vmatpush1.bf16.msra.mxu0 %v2400
    %2539 = vmatprep.subr.bf16.mxu0 %v2403
    %2540 = vmatpush1.bf16.msra.mxu0 %v2402
    %2541 = vmatprep.subr.bf16.mxu0 %v2405
    %2542 = vmatpush1.bf16.msra.mxu0 %v2404
    %2543 = vmatprep.subr.bf16.mxu0 %v2407
    %2544 = vmatpush1.bf16.msra.mxu0 %v2406
    %2545 = vmatprep.mubr.bf16.mxu0 %v2075
    %2546 = vmatmul.mubr.bf16.gmra.mrb[0].mxu0 %v2074
    %v2547 = vpop.f32.mrb[0].mxu0
    %v2548 = vadd.f32 %v2507, %v2547
    %v2549 = vpop.f32.mrb[0].mxu0
    %v2550 = vadd.f32 %v2509, %v2549
    %v2551 = vpop.f32.mrb[0].mxu0
    %v2552 = vpop.f32.mrb[0].mxu0
    %2553 = vdwg.mxu0
    %v2554 = vmax.f32 %v2548, 0.0
    %v2555 = vmax.f32 %v2550, 0.0
    %v2556 = vpack.c.bf16 %v2554, %v2554
    %v2557 = vpack.c.bf16 %v2555, %v2555
    %v2558 = vld [vmem:[#allocation11] sm:$0xff]
    %v2559 = vld [vmem:[#allocation11 + $0x8] sm:$0xff]
    %v2560 = vld [vmem:[#allocation11 + $0x10] sm:$0xff]
    %v2561 = vld [vmem:[#allocation11 + $0x18] sm:$0xff]
    %v2562 = vld [vmem:[#allocation11 + $0x20] sm:$0xff]
    %v2563 = vld [vmem:[#allocation11 + $0x28] sm:$0xff]
    %v2564 = vld [vmem:[#allocation11 + $0x30] sm:$0xff]
    %v2565 = vld [vmem:[#allocation11 + $0x38] sm:$0xff]
    %v2566 = vld [vmem:[#allocation11 + $0x40] sm:$0xff]
    %v2567 = vld [vmem:[#allocation11 + $0x48] sm:$0xff]
    %v2568 = vld [vmem:[#allocation11 + $0x50] sm:$0xff]
    %v2569 = vld [vmem:[#allocation11 + $0x58] sm:$0xff]
    %v2570 = vld [vmem:[#allocation11 + $0x60] sm:$0xff]
    %v2571 = vld [vmem:[#allocation11 + $0x68] sm:$0xff]
    %v2572 = vld [vmem:[#allocation11 + $0x70] sm:$0xff]
    %v2573 = vld [vmem:[#allocation11 + $0x78] sm:$0xff]
    %v2574 = vld [vmem:[#allocation11 + $0x80] sm:$0xff]
    %v2575 = vld [vmem:[#allocation11 + $0x88] sm:$0xff]
    %v2576 = vld [vmem:[#allocation11 + $0x90] sm:$0xff]
    %v2577 = vld [vmem:[#allocation11 + $0x98] sm:$0xff]
    %v2578 = vld [vmem:[#allocation11 + $0xa0] sm:$0xff]
    %v2579 = vld [vmem:[#allocation11 + $0xa8] sm:$0xff]
    %v2580 = vld [vmem:[#allocation11 + $0xb0] sm:$0xff]
    %v2581 = vld [vmem:[#allocation11 + $0xb8] sm:$0xff]
    %v2582 = vld [vmem:[#allocation11 + $0xc0] sm:$0xff]
    %v2583 = vld [vmem:[#allocation11 + $0xc8] sm:$0xff]
    %v2584 = vld [vmem:[#allocation11 + $0xd0] sm:$0xff]
    %v2585 = vld [vmem:[#allocation11 + $0xd8] sm:$0xff]
    %v2586 = vld [vmem:[#allocation11 + $0xe0] sm:$0xff]
    %v2587 = vld [vmem:[#allocation11 + $0xe8] sm:$0xff]
    %v2588 = vld [vmem:[#allocation11 + $0xf0] sm:$0xff]
    %v2589 = vld [vmem:[#allocation11 + $0xf8] sm:$0xff]
    %v2590 = vld [vmem:[%s8] sm:$0x3]
    %v2592 = vlaneseq
    %v2593 = vshrl.u32 %v2592, 7
    %v2594 = vsub.s32 0, %v2593
    %v2595 = vrot.slane %v2590, %v2594
    %v2596 = vlaneseq
    %v2597 = vshrl.u32 %v2596, 7
    %v2598 = vsub.s32 1, %v2597
    %v2599 = vrot.slane %v2590, %v2598
    %v2634 = vunpack.c.l.b16 %v2558
    %v2635 = vunpack.c.h.b16 %v2558
    %v2636 = vunpack.c.l.b16 %v2559
    %v2637 = vunpack.c.h.b16 %v2559
    %v2638 = vunpack.c.l.b16 %v2560
    %v2639 = vunpack.c.h.b16 %v2560
    %v2640 = vunpack.c.l.b16 %v2561
    %v2641 = vunpack.c.h.b16 %v2561
    %v2642 = vunpack.c.l.b16 %v2562
    %v2643 = vunpack.c.h.b16 %v2562
    %v2644 = vunpack.c.l.b16 %v2563
    %v2645 = vunpack.c.h.b16 %v2563
    %v2646 = vunpack.c.l.b16 %v2564
    %v2647 = vunpack.c.h.b16 %v2564
    %v2648 = vunpack.c.l.b16 %v2565
    %v2649 = vunpack.c.h.b16 %v2565
    %v2650 = vunpack.c.l.b16 %v2566
    %v2651 = vunpack.c.h.b16 %v2566
    %v2652 = vunpack.c.l.b16 %v2567
    %v2653 = vunpack.c.h.b16 %v2567
    %v2654 = vunpack.c.l.b16 %v2568
    %v2655 = vunpack.c.h.b16 %v2568
    %v2656 = vunpack.c.l.b16 %v2569
    %v2657 = vunpack.c.h.b16 %v2569
    %v2658 = vunpack.c.l.b16 %v2570
    %v2659 = vunpack.c.h.b16 %v2570
    %v2660 = vunpack.c.l.b16 %v2571
    %v2661 = vunpack.c.h.b16 %v2571
    %v2662 = vunpack.c.l.b16 %v2572
    %v2663 = vunpack.c.h.b16 %v2572
    %v2664 = vunpack.c.l.b16 %v2573
    %v2665 = vunpack.c.h.b16 %v2573
    %v2666 = vunpack.c.l.b16 %v2574
    %v2667 = vunpack.c.h.b16 %v2574
    %v2668 = vunpack.c.l.b16 %v2575
    %v2669 = vunpack.c.h.b16 %v2575
    %v2670 = vunpack.c.l.b16 %v2576
    %v2671 = vunpack.c.h.b16 %v2576
    %v2672 = vunpack.c.l.b16 %v2577
    %v2673 = vunpack.c.h.b16 %v2577
    %v2674 = vunpack.c.l.b16 %v2578
    %v2675 = vunpack.c.h.b16 %v2578
    %v2676 = vunpack.c.l.b16 %v2579
    %v2677 = vunpack.c.h.b16 %v2579
    %v2678 = vunpack.c.l.b16 %v2580
    %v2679 = vunpack.c.h.b16 %v2580
    %v2680 = vunpack.c.l.b16 %v2581
    %v2681 = vunpack.c.h.b16 %v2581
    %v2682 = vunpack.c.l.b16 %v2582
    %v2683 = vunpack.c.h.b16 %v2582
    %v2684 = vunpack.c.l.b16 %v2583
    %v2685 = vunpack.c.h.b16 %v2583
    %v2686 = vunpack.c.l.b16 %v2584
    %v2687 = vunpack.c.h.b16 %v2584
    %v2688 = vunpack.c.l.b16 %v2585
    %v2689 = vunpack.c.h.b16 %v2585
    %v2690 = vunpack.c.l.b16 %v2586
    %v2691 = vunpack.c.h.b16 %v2586
    %v2692 = vunpack.c.l.b16 %v2587
    %v2693 = vunpack.c.h.b16 %v2587
    %v2694 = vunpack.c.l.b16 %v2588
    %v2695 = vunpack.c.h.b16 %v2588
    %v2696 = vunpack.c.l.b16 %v2589
    %v2697 = vunpack.c.h.b16 %v2589
    %v2698 = vpack.c.b16 %v2636, %v2634
    %v2699 = vpack.c.b16 %v2637, %v2635
    %v2700 = vpack.c.b16 %v2640, %v2638
    %v2701 = vpack.c.b16 %v2641, %v2639
    %v2702 = vpack.c.b16 %v2644, %v2642
    %v2703 = vpack.c.b16 %v2645, %v2643
    %v2704 = vpack.c.b16 %v2648, %v2646
    %v2705 = vpack.c.b16 %v2649, %v2647
    %v2706 = vpack.c.b16 %v2652, %v2650
    %v2707 = vpack.c.b16 %v2653, %v2651
    %v2708 = vpack.c.b16 %v2656, %v2654
    %v2709 = vpack.c.b16 %v2657, %v2655
    %v2710 = vpack.c.b16 %v2660, %v2658
    %v2711 = vpack.c.b16 %v2661, %v2659
    %v2712 = vpack.c.b16 %v2664, %v2662
    %v2713 = vpack.c.b16 %v2665, %v2663
    %v2714 = vpack.c.b16 %v2668, %v2666
    %v2715 = vpack.c.b16 %v2669, %v2667
    %v2716 = vpack.c.b16 %v2672, %v2670
    %v2717 = vpack.c.b16 %v2673, %v2671
    %v2718 = vpack.c.b16 %v2676, %v2674
    %v2719 = vpack.c.b16 %v2677, %v2675
    %v2720 = vpack.c.b16 %v2680, %v2678
    %v2721 = vpack.c.b16 %v2681, %v2679
    %v2722 = vpack.c.b16 %v2684, %v2682
    %v2723 = vpack.c.b16 %v2685, %v2683
    %v2724 = vpack.c.b16 %v2688, %v2686
    %v2725 = vpack.c.b16 %v2689, %v2687
    %v2726 = vpack.c.b16 %v2692, %v2690
    %v2727 = vpack.c.b16 %v2693, %v2691
    %v2728 = vpack.c.b16 %v2696, %v2694
    %v2729 = vpack.c.b16 %v2697, %v2695
    %2762 = vmatprep.subr.bf16.mxu0 %v2699
    %2763 = vmatpush1.bf16.msra.mxu0 %v2698
    %2764 = vmatprep.subr.bf16.mxu0 %v2701
    %2765 = vmatpush1.bf16.msra.mxu0 %v2700
    %2766 = vmatprep.subr.bf16.mxu0 %v2703
    %2767 = vmatpush1.bf16.msra.mxu0 %v2702
    %2768 = vmatprep.subr.bf16.mxu0 %v2705
    %2769 = vmatpush1.bf16.msra.mxu0 %v2704
    %2770 = vmatprep.subr.bf16.mxu0 %v2707
    %2771 = vmatpush1.bf16.msra.mxu0 %v2706
    %2772 = vmatprep.subr.bf16.mxu0 %v2709
    %2773 = vmatpush1.bf16.msra.mxu0 %v2708
    %2774 = vmatprep.subr.bf16.mxu0 %v2711
    %2775 = vmatpush1.bf16.msra.mxu0 %v2710
    %2776 = vmatprep.subr.bf16.mxu0 %v2713
    %2777 = vmatpush1.bf16.msra.mxu0 %v2712
    %2778 = vmatprep.subr.bf16.mxu0 %v2715
    %2779 = vmatpush1.bf16.msra.mxu0 %v2714
    %2780 = vmatprep.subr.bf16.mxu0 %v2717
    %2781 = vmatpush1.bf16.msra.mxu0 %v2716
    %2782 = vmatprep.subr.bf16.mxu0 %v2719
    %2783 = vmatpush1.bf16.msra.mxu0 %v2718
    %2784 = vmatprep.subr.bf16.mxu0 %v2721
    %2785 = vmatpush1.bf16.msra.mxu0 %v2720
    %2786 = vmatprep.subr.bf16.mxu0 %v2723
    %2787 = vmatpush1.bf16.msra.mxu0 %v2722
    %2788 = vmatprep.subr.bf16.mxu0 %v2725
    %2789 = vmatpush1.bf16.msra.mxu0 %v2724
    %2790 = vmatprep.subr.bf16.mxu0 %v2727
    %2791 = vmatpush1.bf16.msra.mxu0 %v2726
    %2792 = vmatprep.subr.bf16.mxu0 %v2729
    %2793 = vmatpush1.bf16.msra.mxu0 %v2728
    %2794 = vmatprep.mubr.bf16.mxu0 %v2557
    %2795 = vmatmul.mubr.bf16.gmra.mrb[0].mxu0 %v2556
    %v2796 = vpop.f32.mrb[0].mxu0
    %v2797 = vadd.f32 %v2595, %v2796
    %v2798 = vpop.f32.mrb[0].mxu0
    %v2799 = vadd.f32 %v2599, %v2798
    %v2800 = vpop.f32.mrb[0].mxu0
    %v2801 = vpop.f32.mrb[0].mxu0
    %2802 = vdwg.mxu0
    %2803 = vst [vmem:[#allocation12] sm:$0xff] %v2797
    %2804 = vst [vmem:[#allocation12 + $0x8] sm:$0xff] %v2799
    // Predicated region
    $region58: #{tpu_custom_call.1} parent=1 // pred_check
      _
    $region59: #{tpu_custom_call.1} parent=1 // pred_check_branch
      %2806 = sbr.rel (0) target = $region61
    $region60: #{tpu_custom_call.1} parent=1 // pred_region
      %s2808 = ssub.s32 256, 256
      %2809 = vsyncadd [#allocation5], %s2808
      %s2811 = sshll.u32 [#allocation12], 4
      %s2812 = int_to_ptr.vmem [resolvable:$true] %s2811
      %2814 = dma.vmem_to_hbm [thread:$0]  %s2812, 256, %s9, [#allocation5]
    $region61: #{tpu_custom_call.1} parent=1 // pred_fallthru
      _
    // Predicated region
    $region62: #{tpu_custom_call.1} parent=1 // pred_check
      _
    $region63: #{tpu_custom_call.1} parent=1 // pred_check_branch
      %2816 = sbr.rel (0) target = $region65
    $region64: #{tpu_custom_call.1} parent=1 // pred_region
      %2817 = dma.done [#allocation5], 256
    $region65: #{tpu_custom_call.1} parent=1 // pred_fallthru
      _
    %2818 = vsyncpa [#allocation4], 1
    %2819 = vsyncpa [#allocation7], 1
    %2820 = vsyncpa [#allocation10], 1
    %2821 = vsyncpa [#allocation5], 1

</llo_original>
